<compile_context>
chip_gen: v5e
topology: v5e:2x2
jax: 0.10.0
libtpu: 0.0.40
codegen_flags: <defaults>
</compile_context>

<pallas_src>
import functools

import jax
import jax.numpy as jnp
from jax.experimental import pallas as pl
from jax.experimental.pallas import tpu as pltpu

F_PAD = 128          # hidden feature width
LANE = 128           # lane width (batch tile granularity)
MAX_TM = 4096        # max batch-tile (lanes) per grid step
NEG_SLOPE = 0.01     # F.leaky_relu default


def _round_up(n, m):
    return ((n + m - 1) // m) * m


@functools.lru_cache(maxsize=1)
def _bf16_valu():
    """True on bf16-native-VALU chips (v6e / v7x); f32 elementwise otherwise."""
    try:
        kind = jax.devices()[0].device_kind.lower()
    except Exception:
        return False
    return any(tag in kind for tag in ("v6", "v7", "6e", "7x"))


def _batch_tiling(B):
    """Lane-axis batch tile (multiple of 128) and padded batch size."""
    b128 = _round_up(max(B, 1), LANE)
    if b128 <= LANE:
        return LANE, LANE                      # single minimal tile
    n_tiles = max(2, pl.cdiv(b128, MAX_TM))    # >= 2 tiles -> both megacore TCs
    tm = min(MAX_TM, _round_up(pl.cdiv(b128, n_tiles), LANE))
    return tm, n_tiles * tm


def _mlp_kernel(xt_ref, w1_ref, w2_ref, w3_ref, w4_ref, w5_ref, bvec_ref, o_ref,
                *, in_dim, bf16_elem, l1_mxu):
    """Whole 5-layer MLP on one (features, TM) tile (batch on the lane axis)."""
    bv = bvec_ref[...]                                   # (128, 8) f32: bias columns + b5

    def bias_leaky(y, b):
        # y: (128, TM) f32 matmul accumulator, b: (128, 1) f32 bias column
        if bf16_elem:
            y = y.astype(jnp.bfloat16) + b.astype(jnp.bfloat16)
        else:
            y = y + b
        y = jnp.maximum(y, NEG_SLOPE * y)                # == leaky_relu (2 VALU ops)
        return y.astype(jnp.bfloat16)

    xt = xt_ref[...]                                     # (K_IN, TM) bf16
    if l1_mxu:
        # layer 1 on the MXU: (128, K_IN) @ (K_IN, TM), K_IN = 16
        y1 = jnp.dot(w1_ref[...], xt, preferred_element_type=jnp.float32)
    else:
        # VPU fallback: in_dim outer-product multiply-adds (in_dim is static)
        w1 = w1_ref[...].astype(jnp.float32)             # (128, K_IN)
        xf = xt.astype(jnp.float32)
        y1 = w1[:, 0:1] * xf[0:1, :]
        for k in range(1, in_dim):
            y1 = y1 + w1[:, k:k + 1] * xf[k:k + 1, :]
    h = bias_leaky(y1, bv[:, 0:1])

    # layers 2-4: bf16 128x128 MXU matmuls, f32 accumulation
    h = bias_leaky(jnp.dot(w2_ref[...], h, preferred_element_type=jnp.float32), bv[:, 1:2])
    h = bias_leaky(jnp.dot(w3_ref[...], h, preferred_element_type=jnp.float32), bv[:, 2:3])
    h = bias_leaky(jnp.dot(w4_ref[...], h, preferred_element_type=jnp.float32), bv[:, 3:4])
    # rows 64..127 of h stay exactly 0 (zero-padded W4 rows / b4 entries, leaky(0)=0)

    # layer 5 (64 -> 1): tiny MXU matvec, lane-dense (1, TM) output row
    y5 = jnp.dot(w5_ref[...], h, preferred_element_type=jnp.float32)   # (16, TM)
    o_ref[...] = (y5[0:1, :] + bv[0:1, 4:5]).astype(o_ref.dtype)


def prepare_params(params):
    """One-time transpose / pad / bf16 cast of the weights (hoisted out of forward)."""
    (w1, b1), (w2, b2), (w3, b3), (w4, b4), (w5, b5) = params
    in_dim = w1.shape[0]
    k_in = max(16, _round_up(in_dim, 16))                # pad features to a bf16 sublane tile

    w1p = jnp.zeros((F_PAD, k_in), jnp.bfloat16).at[:, :in_dim].set(w1.T.astype(jnp.bfloat16))
    w2p = w2.T.astype(jnp.bfloat16)                      # (128, 128)
    w3p = w3.T.astype(jnp.bfloat16)                      # (128, 128)
    w4p = jnp.zeros((F_PAD, F_PAD), jnp.bfloat16).at[:64, :].set(w4.T.astype(jnp.bfloat16))
    w5p = jnp.zeros((16, F_PAD), jnp.bfloat16).at[0, :64].set(w5[:, 0].astype(jnp.bfloat16))

    bvec = jnp.zeros((F_PAD, 8), jnp.float32)            # bias columns (+ b5 replicated)
    bvec = bvec.at[:, 0].set(b1)
    bvec = bvec.at[:, 1].set(b2)
    bvec = bvec.at[:, 2].set(b3)
    bvec = bvec.at[:64, 3].set(b4)
    bvec = bvec.at[:, 4].set(b5[0])
    return (w1p, w2p, w3p, w4p, w5p, bvec)


@functools.partial(jax.jit, static_argnames=("l1_mxu",))
def _forward(x, prepared, *, l1_mxu):
    w1p, w2p, w3p, w4p, w5p, bvec = prepared
    B, in_dim = x.shape
    k_in = w1p.shape[1]
    tm, b_pad = _batch_tiling(B)
    n_tiles = b_pad // tm

    # batch-in-lanes input: (K_IN, b_pad) bf16, zero-padded features / batch
    xt = jnp.zeros((k_in, b_pad), jnp.bfloat16).at[:in_dim, :B].set(
        x.T.astype(jnp.bfloat16))

    kernel = functools.partial(_mlp_kernel, in_dim=in_dim,
                               bf16_elem=_bf16_valu(), l1_mxu=l1_mxu)

    out = pl.pallas_call(
        kernel,
        out_shape=jax.ShapeDtypeStruct((1, b_pad), jnp.float32),
        grid_spec=pltpu.PrefetchScalarGridSpec(
            num_scalar_prefetch=0,
            grid=(n_tiles,),
            in_specs=[
                pl.BlockSpec((k_in, tm), lambda i: (0, i)),       # x^T tile (lane-dense)
                pl.BlockSpec((F_PAD, k_in), lambda i: (0, 0)),    # W1^T (128, 16)
                pl.BlockSpec((F_PAD, F_PAD), lambda i: (0, 0)),   # W2^T
                pl.BlockSpec((F_PAD, F_PAD), lambda i: (0, 0)),   # W3^T
                pl.BlockSpec((F_PAD, F_PAD), lambda i: (0, 0)),   # W4^T (rows 64+ zero)
                pl.BlockSpec((16, F_PAD), lambda i: (0, 0)),      # W5^T row (lanes 64+ zero)
                pl.BlockSpec((F_PAD, 8), lambda i: (0, 0)),       # fused bias columns + b5
            ],
            out_specs=pl.BlockSpec((1, tm), lambda i: (0, i)),    # lane-dense output row
        ),
        compiler_params=pltpu.CompilerParams(
            dimension_semantics=("parallel",),
            vmem_limit_bytes=32 * 1024 * 1024),
    )(xt, w1p, w2p, w3p, w4p, w5p, bvec)

    return out[0, :B].reshape(B, 1)


_L1_MXU_OK = None


def regression_forward(x, prepared):
    """x: (B, input_dim) float32 -> (B, 1) float32."""
    global _L1_MXU_OK
    if _L1_MXU_OK is None:
        try:
            out = _forward(x, prepared, l1_mxu=True)
            jax.block_until_ready(out)
            _L1_MXU_OK = True
            return out
        except Exception:
            # tiny-K (16) matmul rejected by this Mosaic lowering: VPU layer-1 fallback
            _L1_MXU_OK = False
    return _forward(x, prepared, l1_mxu=_L1_MXU_OK)


def init_params(key, input_dim):
    """Deterministic synthetic parameters (PyTorch Linear shapes, stored transposed)."""
    dims = [(input_dim, 128), (128, 128), (128, 128), (128, 64), (64, 1)]
    params = []
    for (din, dout) in dims:
        key, kw, kb = jax.random.split(key, 3)
        bound = 1.0 / jnp.sqrt(jnp.float32(din))
        w = jax.random.uniform(kw, (din, dout), jnp.float32, -bound, bound)
        b = jax.random.uniform(kb, (dout,), jnp.float32, -bound, bound)
        params.append((w, b))
    return params


def reference_forward(x, params):
    """Pure-JAX f32 reference of the same MLP."""
    h = x
    for i, (w, b) in enumerate(params):
        h = h @ w + b
        if i < len(params) - 1:
            h = jnp.where(h > 0, h, NEG_SLOPE * h)
    return h


if __name__ == "__main__":
    key = jax.random.PRNGKey(0)
    input_dim = 3            # cl_mode == 'thickness'

    kx, kx2, kp = jax.random.split(key, 3)
    params = init_params(kp, input_dim)
    prepared = prepare_params(params)        # one-time transpose/pad + bf16 cast

    # small-batch check (single 128-lane tile)
    x = jax.random.normal(kx, (16, input_dim), jnp.float32)
    out = jax.block_until_ready(regression_forward(x, prepared))
    ref = reference_forward(x, params)
    assert out.shape == (16, 1), out.shape
    err = float(jnp.max(jnp.abs(out - ref)))
    assert jnp.allclose(out, ref, atol=5e-2, rtol=5e-2), f"max abs err {err}"

    # multi-tile check (tm=384, 2 grid steps, padded batch, megacore path)
    x2 = jax.random.normal(kx2, (600, input_dim), jnp.float32)
    out2 = jax.block_until_ready(regression_forward(x2, prepared))
    ref2 = reference_forward(x2, params)
    assert out2.shape == (600, 1), out2.shape
    err2 = float(jnp.max(jnp.abs(out2 - ref2)))
    assert jnp.allclose(out2, ref2, atol=5e-2, rtol=5e-2), f"max abs err {err2}"

    print("KERNEL_OK")
</pallas_src>

<mosaic_0001>
module attributes {stable_mosaic.version = 11 : i64} {
  func.func @_mlp_kernel(%arg0: i32, %arg1: memref<16x128xbf16, #tpu.memory_space<vmem>>, %arg2: memref<128x16xbf16, #tpu.memory_space<vmem>>, %arg3: memref<128x128xbf16, #tpu.memory_space<vmem>>, %arg4: memref<128x128xbf16, #tpu.memory_space<vmem>>, %arg5: memref<128x128xbf16, #tpu.memory_space<vmem>>, %arg6: memref<16x128xbf16, #tpu.memory_space<vmem>>, %arg7: memref<128x8xf32, #tpu.memory_space<vmem>>, %arg8: memref<1x128xf32, #tpu.memory_space<vmem>>) attributes {dimension_semantics = [#tpu.dimension_semantics<parallel>], iteration_bounds = array<i64: 1>, scalar_prefetch = 0 : i64, scratch_operands = 0 : i64, tpu.core_type = #tpu.core_type<tc>, window_params = [{transform_indices = @transform_0, window_bounds = array<i64: 16, 128>}, {pipeline_mode = #tpu.pipeline_mode<synchronous>, transform_indices = @transform_1, window_bounds = array<i64: 128, 16>}, {pipeline_mode = #tpu.pipeline_mode<synchronous>, transform_indices = @transform_2, window_bounds = array<i64: 128, 128>}, {pipeline_mode = #tpu.pipeline_mode<synchronous>, transform_indices = @transform_3, window_bounds = array<i64: 128, 128>}, {pipeline_mode = #tpu.pipeline_mode<synchronous>, transform_indices = @transform_4, window_bounds = array<i64: 128, 128>}, {pipeline_mode = #tpu.pipeline_mode<synchronous>, transform_indices = @transform_5, window_bounds = array<i64: 16, 128>}, {pipeline_mode = #tpu.pipeline_mode<synchronous>, transform_indices = @transform_6, window_bounds = array<i64: 128, 8>}, {transform_indices = @transform_7, window_bounds = array<i64: 1, 128>}]} {
    %c0 = arith.constant 0 : index
    %c0_0 = arith.constant 0 : index
    %0 = vector.load %arg7[%c0, %c0_0] : memref<128x8xf32, #tpu.memory_space<vmem>>, vector<128x8xf32>
    %c0_1 = arith.constant 0 : index
    %c0_2 = arith.constant 0 : index
    %1 = vector.load %arg1[%c0_1, %c0_2] : memref<16x128xbf16, #tpu.memory_space<vmem>>, vector<16x128xbf16>
    %c0_3 = arith.constant 0 : index
    %c0_4 = arith.constant 0 : index
    %2 = vector.load %arg2[%c0_3, %c0_4] : memref<128x16xbf16, #tpu.memory_space<vmem>>, vector<128x16xbf16>
    %cst = arith.constant dense<0.000000e+00> : vector<128x128xf32>
    %3 = tpu.matmul %2, %1, %cst {dimension_numbers = #tpu.dot_dimension_numbers<[1], [0], [0], [1], [0, 0, 1, 1], [], []>} : vector<128x16xbf16>, vector<16x128xbf16>, vector<128x128xf32> -> vector<128x128xf32>
    %4 = vector.extract_strided_slice %0 {offsets = [0, 0], sizes = [128, 1], strides = [1, 1]} : vector<128x8xf32> to vector<128x1xf32>
    %5 = vector.broadcast %4 : vector<128x1xf32> to vector<128x128xf32>
    %6 = arith.addf %3, %5 : vector<128x128xf32>
    %cst_5 = arith.constant 0.00999999977 : f32
    %7 = vector.broadcast %cst_5 : f32 to vector<128x128xf32>
    %8 = arith.mulf %7, %6 : vector<128x128xf32>
    %9 = arith.maximumf %6, %8 : vector<128x128xf32>
    %10 = arith.truncf %9 : vector<128x128xf32> to vector<128x128xbf16>
    %c0_6 = arith.constant 0 : index
    %c0_7 = arith.constant 0 : index
    %11 = vector.load %arg3[%c0_6, %c0_7] : memref<128x128xbf16, #tpu.memory_space<vmem>>, vector<128x128xbf16>
    %cst_8 = arith.constant dense<0.000000e+00> : vector<128x128xf32>
    %12 = tpu.matmul %11, %10, %cst_8 {dimension_numbers = #tpu.dot_dimension_numbers<[1], [0], [0], [1], [0, 0, 1, 1], [], []>} : vector<128x128xbf16>, vector<128x128xbf16>, vector<128x128xf32> -> vector<128x128xf32>
    %13 = vector.extract_strided_slice %0 {offsets = [0, 1], sizes = [128, 1], strides = [1, 1]} : vector<128x8xf32> to vector<128x1xf32>
    %14 = vector.broadcast %13 : vector<128x1xf32> to vector<128x128xf32>
    %15 = arith.addf %12, %14 : vector<128x128xf32>
    %cst_9 = arith.constant 0.00999999977 : f32
    %16 = vector.broadcast %cst_9 : f32 to vector<128x128xf32>
    %17 = arith.mulf %16, %15 : vector<128x128xf32>
    %18 = arith.maximumf %15, %17 : vector<128x128xf32>
    %19 = arith.truncf %18 : vector<128x128xf32> to vector<128x128xbf16>
    %c0_10 = arith.constant 0 : index
    %c0_11 = arith.constant 0 : index
    %20 = vector.load %arg4[%c0_10, %c0_11] : memref<128x128xbf16, #tpu.memory_space<vmem>>, vector<128x128xbf16>
    %cst_12 = arith.constant dense<0.000000e+00> : vector<128x128xf32>
    %21 = tpu.matmul %20, %19, %cst_12 {dimension_numbers = #tpu.dot_dimension_numbers<[1], [0], [0], [1], [0, 0, 1, 1], [], []>} : vector<128x128xbf16>, vector<128x128xbf16>, vector<128x128xf32> -> vector<128x128xf32>
    %22 = vector.extract_strided_slice %0 {offsets = [0, 2], sizes = [128, 1], strides = [1, 1]} : vector<128x8xf32> to vector<128x1xf32>
    %23 = vector.broadcast %22 : vector<128x1xf32> to vector<128x128xf32>
    %24 = arith.addf %21, %23 : vector<128x128xf32>
    %cst_13 = arith.constant 0.00999999977 : f32
    %25 = vector.broadcast %cst_13 : f32 to vector<128x128xf32>
    %26 = arith.mulf %25, %24 : vector<128x128xf32>
    %27 = arith.maximumf %24, %26 : vector<128x128xf32>
    %28 = arith.truncf %27 : vector<128x128xf32> to vector<128x128xbf16>
    %c0_14 = arith.constant 0 : index
    %c0_15 = arith.constant 0 : index
    %29 = vector.load %arg5[%c0_14, %c0_15] : memref<128x128xbf16, #tpu.memory_space<vmem>>, vector<128x128xbf16>
    %cst_16 = arith.constant dense<0.000000e+00> : vector<128x128xf32>
    %30 = tpu.matmul %29, %28, %cst_16 {dimension_numbers = #tpu.dot_dimension_numbers<[1], [0], [0], [1], [0, 0, 1, 1], [], []>} : vector<128x128xbf16>, vector<128x128xbf16>, vector<128x128xf32> -> vector<128x128xf32>
    %31 = vector.extract_strided_slice %0 {offsets = [0, 3], sizes = [128, 1], strides = [1, 1]} : vector<128x8xf32> to vector<128x1xf32>
    %32 = vector.broadcast %31 : vector<128x1xf32> to vector<128x128xf32>
    %33 = arith.addf %30, %32 : vector<128x128xf32>
    %cst_17 = arith.constant 0.00999999977 : f32
    %34 = vector.broadcast %cst_17 : f32 to vector<128x128xf32>
    %35 = arith.mulf %34, %33 : vector<128x128xf32>
    %36 = arith.maximumf %33, %35 : vector<128x128xf32>
    %37 = arith.truncf %36 : vector<128x128xf32> to vector<128x128xbf16>
    %c0_18 = arith.constant 0 : index
    %c0_19 = arith.constant 0 : index
    %38 = vector.load %arg6[%c0_18, %c0_19] : memref<16x128xbf16, #tpu.memory_space<vmem>>, vector<16x128xbf16>
    %cst_20 = arith.constant dense<0.000000e+00> : vector<16x128xf32>
    %39 = tpu.matmul %38, %37, %cst_20 {dimension_numbers = #tpu.dot_dimension_numbers<[1], [0], [0], [1], [0, 0, 1, 1], [], []>} : vector<16x128xbf16>, vector<128x128xbf16>, vector<16x128xf32> -> vector<16x128xf32>
    %40 = vector.extract_strided_slice %39 {offsets = [0, 0], sizes = [1, 128], strides = [1, 1]} : vector<16x128xf32> to vector<1x128xf32>
    %41 = vector.extract_strided_slice %0 {offsets = [0, 4], sizes = [1, 1], strides = [1, 1]} : vector<128x8xf32> to vector<1x1xf32>
    %42 = vector.broadcast %41 : vector<1x1xf32> to vector<1x128xf32>
    %43 = arith.addf %40, %42 : vector<1x128xf32>
    %c0_21 = arith.constant 0 : index
    %c0_22 = arith.constant 0 : index
    %44 = vector.load %arg8[%c0_21, %c0_22] : memref<1x128xf32, #tpu.memory_space<vmem>>, vector<1x128xf32>
    tpu.vector_store %arg8[%c0_21, %c0_22], %43 {strides = array<i32>} : memref<1x128xf32, #tpu.memory_space<vmem>>, vector<1x128xf32>,
    return
  }
  func.func @transform_0(%arg0: i32) -> (i32, i32) {
    %c0_i32 = arith.constant 0 : i32
    %c0_i32_0 = arith.constant 0 : i32
    return %c0_i32, %arg0 : i32, i32
  }
  func.func @transform_1(%arg0: i32) -> (i32, i32) {
    %c0_i32 = arith.constant 0 : i32
    %c0_i32_0 = arith.constant 0 : i32
    %c0_i32_1 = arith.constant 0 : i32
    return %c0_i32, %c0_i32_0 : i32, i32
  }
  func.func @transform_2(%arg0: i32) -> (i32, i32) {
    %c0_i32 = arith.constant 0 : i32
    %c0_i32_0 = arith.constant 0 : i32
    %c0_i32_1 = arith.constant 0 : i32
    return %c0_i32, %c0_i32_0 : i32, i32
  }
  func.func @transform_3(%arg0: i32) -> (i32, i32) {
    %c0_i32 = arith.constant 0 : i32
    %c0_i32_0 = arith.constant 0 : i32
    %c0_i32_1 = arith.constant 0 : i32
    return %c0_i32, %c0_i32_0 : i32, i32
  }
  func.func @transform_4(%arg0: i32) -> (i32, i32) {
    %c0_i32 = arith.constant 0 : i32
    %c0_i32_0 = arith.constant 0 : i32
    %c0_i32_1 = arith.constant 0 : i32
    return %c0_i32, %c0_i32_0 : i32, i32
  }
  func.func @transform_5(%arg0: i32) -> (i32, i32) {
    %c0_i32 = arith.constant 0 : i32
    %c0_i32_0 = arith.constant 0 : i32
    %c0_i32_1 = arith.constant 0 : i32
    return %c0_i32, %c0_i32_0 : i32, i32
  }
  func.func @transform_6(%arg0: i32) -> (i32, i32) {
    %c0_i32 = arith.constant 0 : i32
    %c0_i32_0 = arith.constant 0 : i32
    %c0_i32_1 = arith.constant 0 : i32
    return %c0_i32, %c0_i32_0 : i32, i32
  }
  func.func @transform_7(%arg0: i32) -> (i32, i32) {
    %c0_i32 = arith.constant 0 : i32
    %c0_i32_0 = arith.constant 0 : i32
    return %c0_i32, %arg0 : i32, i32
  }
}

module attributes {stable_mosaic.version = 11 : i64} {
  func.func @_mlp_kernel(%arg0: i32, %arg1: memref<16x128xbf16, #tpu.memory_space<vmem>>, %arg2: memref<128x16xbf16, #tpu.memory_space<vmem>>, %arg3: memref<128x128xbf16, #tpu.memory_space<vmem>>, %arg4: memref<128x128xbf16, #tpu.memory_space<vmem>>, %arg5: memref<128x128xbf16, #tpu.memory_space<vmem>>, %arg6: memref<16x128xbf16, #tpu.memory_space<vmem>>, %arg7: memref<128x8xf32, #tpu.memory_space<vmem>>, %arg8: memref<1x128xf32, #tpu.memory_space<vmem>>) attributes {dimension_semantics = [#tpu.dimension_semantics<parallel>], iteration_bounds = array<i64: 1>, scalar_prefetch = 0 : i64, scratch_operands = 0 : i64, tpu.core_type = #tpu.core_type<tc>, window_params = [{transform_indices = @transform_0, window_bounds = array<i64: 16, 128>}, {pipeline_mode = #tpu.pipeline_mode<synchronous>, transform_indices = @transform_1, window_bounds = array<i64: 128, 16>}, {pipeline_mode = #tpu.pipeline_mode<synchronous>, transform_indices = @transform_2, window_bounds = array<i64: 128, 128>}, {pipeline_mode = #tpu.pipeline_mode<synchronous>, transform_indices = @transform_3, window_bounds = array<i64: 128, 128>}, {pipeline_mode = #tpu.pipeline_mode<synchronous>, transform_indices = @transform_4, window_bounds = array<i64: 128, 128>}, {pipeline_mode = #tpu.pipeline_mode<synchronous>, transform_indices = @transform_5, window_bounds = array<i64: 16, 128>}, {pipeline_mode = #tpu.pipeline_mode<synchronous>, transform_indices = @transform_6, window_bounds = array<i64: 128, 8>}, {transform_indices = @transform_7, window_bounds = array<i64: 1, 128>}]} {
    %c0 = arith.constant 0 : index
    %c0_0 = arith.constant 0 : index
    %0 = vector.load %arg7[%c0, %c0_0] : memref<128x8xf32, #tpu.memory_space<vmem>>, vector<128x8xf32>
    %c0_1 = arith.constant 0 : index
    %c0_2 = arith.constant 0 : index
    %1 = vector.load %arg1[%c0_1, %c0_2] : memref<16x128xbf16, #tpu.memory_space<vmem>>, vector<16x128xbf16>
    %c0_3 = arith.constant 0 : index
    %c0_4 = arith.constant 0 : index
    %2 = vector.load %arg2[%c0_3, %c0_4] : memref<128x16xbf16, #tpu.memory_space<vmem>>, vector<128x16xbf16>
    %3 = arith.extf %2 : vector<128x16xbf16> to vector<128x16xf32>
    %4 = arith.extf %1 : vector<16x128xbf16> to vector<16x128xf32>
    %5 = vector.extract_strided_slice %3 {offsets = [0, 0], sizes = [128, 1], strides = [1, 1]} : vector<128x16xf32> to vector<128x1xf32>
    %6 = vector.extract_strided_slice %4 {offsets = [0, 0], sizes = [1, 128], strides = [1, 1]} : vector<16x128xf32> to vector<1x128xf32>
    %7 = vector.broadcast %5 : vector<128x1xf32> to vector<128x128xf32>
    %8 = vector.broadcast %6 : vector<1x128xf32> to vector<128x128xf32>
    %9 = arith.mulf %7, %8 : vector<128x128xf32>
    %10 = vector.extract_strided_slice %3 {offsets = [0, 1], sizes = [128, 1], strides = [1, 1]} : vector<128x16xf32> to vector<128x1xf32>
    %11 = vector.extract_strided_slice %4 {offsets = [1, 0], sizes = [1, 128], strides = [1, 1]} : vector<16x128xf32> to vector<1x128xf32>
    %12 = vector.broadcast %10 : vector<128x1xf32> to vector<128x128xf32>
    %13 = vector.broadcast %11 : vector<1x128xf32> to vector<128x128xf32>
    %14 = arith.mulf %12, %13 : vector<128x128xf32>
    %15 = arith.addf %9, %14 : vector<128x128xf32>
    %16 = vector.extract_strided_slice %3 {offsets = [0, 2], sizes = [128, 1], strides = [1, 1]} : vector<128x16xf32> to vector<128x1xf32>
    %17 = vector.extract_strided_slice %4 {offsets = [2, 0], sizes = [1, 128], strides = [1, 1]} : vector<16x128xf32> to vector<1x128xf32>
    %18 = vector.broadcast %16 : vector<128x1xf32> to vector<128x128xf32>
    %19 = vector.broadcast %17 : vector<1x128xf32> to vector<128x128xf32>
    %20 = arith.mulf %18, %19 : vector<128x128xf32>
    %21 = arith.addf %15, %20 : vector<128x128xf32>
    %22 = vector.extract_strided_slice %0 {offsets = [0, 0], sizes = [128, 1], strides = [1, 1]} : vector<128x8xf32> to vector<128x1xf32>
    %23 = vector.broadcast %22 : vector<128x1xf32> to vector<128x128xf32>
    %24 = arith.addf %21, %23 : vector<128x128xf32>
    %cst = arith.constant 0.00999999977 : f32
    %25 = vector.broadcast %cst : f32 to vector<128x128xf32>
    %26 = arith.mulf %25, %24 : vector<128x128xf32>
    %27 = arith.maximumf %24, %26 : vector<128x128xf32>
    %28 = arith.truncf %27 : vector<128x128xf32> to vector<128x128xbf16>
    %c0_5 = arith.constant 0 : index
    %c0_6 = arith.constant 0 : index
    %29 = vector.load %arg3[%c0_5, %c0_6] : memref<128x128xbf16, #tpu.memory_space<vmem>>, vector<128x128xbf16>
    %cst_7 = arith.constant dense<0.000000e+00> : vector<128x128xf32>
    %30 = tpu.matmul %29, %28, %cst_7 {dimension_numbers = #tpu.dot_dimension_numbers<[1], [0], [0], [1], [0, 0, 1, 1], [], []>} : vector<128x128xbf16>, vector<128x128xbf16>, vector<128x128xf32> -> vector<128x128xf32>
    %31 = vector.extract_strided_slice %0 {offsets = [0, 1], sizes = [128, 1], strides = [1, 1]} : vector<128x8xf32> to vector<128x1xf32>
    %32 = vector.broadcast %31 : vector<128x1xf32> to vector<128x128xf32>
    %33 = arith.addf %30, %32 : vector<128x128xf32>
    %cst_8 = arith.constant 0.00999999977 : f32
    %34 = vector.broadcast %cst_8 : f32 to vector<128x128xf32>
    %35 = arith.mulf %34, %33 : vector<128x128xf32>
    %36 = arith.maximumf %33, %35 : vector<128x128xf32>
    %37 = arith.truncf %36 : vector<128x128xf32> to vector<128x128xbf16>
    %c0_9 = arith.constant 0 : index
    %c0_10 = arith.constant 0 : index
    %38 = vector.load %arg4[%c0_9, %c0_10] : memref<128x128xbf16, #tpu.memory_space<vmem>>, vector<128x128xbf16>
    %cst_11 = arith.constant dense<0.000000e+00> : vector<128x128xf32>
    %39 = tpu.matmul %38, %37, %cst_11 {dimension_numbers = #tpu.dot_dimension_numbers<[1], [0], [0], [1], [0, 0, 1, 1], [], []>} : vector<128x128xbf16>, vector<128x128xbf16>, vector<128x128xf32> -> vector<128x128xf32>
    %40 = vector.extract_strided_slice %0 {offsets = [0, 2], sizes = [128, 1], strides = [1, 1]} : vector<128x8xf32> to vector<128x1xf32>
    %41 = vector.broadcast %40 : vector<128x1xf32> to vector<128x128xf32>
    %42 = arith.addf %39, %41 : vector<128x128xf32>
    %cst_12 = arith.constant 0.00999999977 : f32
    %43 = vector.broadcast %cst_12 : f32 to vector<128x128xf32>
    %44 = arith.mulf %43, %42 : vector<128x128xf32>
    %45 = arith.maximumf %42, %44 : vector<128x128xf32>
    %46 = arith.truncf %45 : vector<128x128xf32> to vector<128x128xbf16>
    %c0_13 = arith.constant 0 : index
    %c0_14 = arith.constant 0 : index
    %47 = vector.load %arg5[%c0_13, %c0_14] : memref<128x128xbf16, #tpu.memory_space<vmem>>, vector<128x128xbf16>
    %cst_15 = arith.constant dense<0.000000e+00> : vector<128x128xf32>
    %48 = tpu.matmul %47, %46, %cst_15 {dimension_numbers = #tpu.dot_dimension_numbers<[1], [0], [0], [1], [0, 0, 1, 1], [], []>} : vector<128x128xbf16>, vector<128x128xbf16>, vector<128x128xf32> -> vector<128x128xf32>
    %49 = vector.extract_strided_slice %0 {offsets = [0, 3], sizes = [128, 1], strides = [1, 1]} : vector<128x8xf32> to vector<128x1xf32>
    %50 = vector.broadcast %49 : vector<128x1xf32> to vector<128x128xf32>
    %51 = arith.addf %48, %50 : vector<128x128xf32>
    %cst_16 = arith.constant 0.00999999977 : f32
    %52 = vector.broadcast %cst_16 : f32 to vector<128x128xf32>
    %53 = arith.mulf %52, %51 : vector<128x128xf32>
    %54 = arith.maximumf %51, %53 : vector<128x128xf32>
    %55 = arith.truncf %54 : vector<128x128xf32> to vector<128x128xbf16>
    %c0_17 = arith.constant 0 : index
    %c0_18 = arith.constant 0 : index
    %56 = vector.load %arg6[%c0_17, %c0_18] : memref<16x128xbf16, #tpu.memory_space<vmem>>, vector<16x128xbf16>
    %cst_19 = arith.constant dense<0.000000e+00> : vector<16x128xf32>
    %57 = tpu.matmul %56, %55, %cst_19 {dimension_numbers = #tpu.dot_dimension_numbers<[1], [0], [0], [1], [0, 0, 1, 1], [], []>} : vector<16x128xbf16>, vector<128x128xbf16>, vector<16x128xf32> -> vector<16x128xf32>
    %58 = vector.extract_strided_slice %57 {offsets = [0, 0], sizes = [1, 128], strides = [1, 1]} : vector<16x128xf32> to vector<1x128xf32>
    %59 = vector.extract_strided_slice %0 {offsets = [0, 4], sizes = [1, 1], strides = [1, 1]} : vector<128x8xf32> to vector<1x1xf32>
    %60 = vector.broadcast %59 : vector<1x1xf32> to vector<1x128xf32>
    %61 = arith.addf %58, %60 : vector<1x128xf32>
    %c0_20 = arith.constant 0 : index
    %c0_21 = arith.constant 0 : index
    %62 = vector.load %arg8[%c0_20, %c0_21] : memref<1x128xf32, #tpu.memory_space<vmem>>, vector<1x128xf32>
    tpu.vector_store %arg8[%c0_20, %c0_21], %61 {strides = array<i32>} : memref<1x128xf32, #tpu.memory_space<vmem>>, vector<1x128xf32>,
    return
  }
  func.func @transform_0(%arg0: i32) -> (i32, i32) {
    %c0_i32 = arith.constant 0 : i32
    %c0_i32_0 = arith.constant 0 : i32
    return %c0_i32, %arg0 : i32, i32
  }
  func.func @transform_1(%arg0: i32) -> (i32, i32) {
    %c0_i32 = arith.constant 0 : i32
    %c0_i32_0 = arith.constant 0 : i32
    %c0_i32_1 = arith.constant 0 : i32
    return %c0_i32, %c0_i32_0 : i32, i32
  }
  func.func @transform_2(%arg0: i32) -> (i32, i32) {
    %c0_i32 = arith.constant 0 : i32
    %c0_i32_0 = arith.constant 0 : i32
    %c0_i32_1 = arith.constant 0 : i32
    return %c0_i32, %c0_i32_0 : i32, i32
  }
  func.func @transform_3(%arg0: i32) -> (i32, i32) {
    %c0_i32 = arith.constant 0 : i32
    %c0_i32_0 = arith.constant 0 : i32
    %c0_i32_1 = arith.constant 0 : i32
    return %c0_i32, %c0_i32_0 : i32, i32
  }
  func.func @transform_4(%arg0: i32) -> (i32, i32) {
    %c0_i32 = arith.constant 0 : i32
    %c0_i32_0 = arith.constant 0 : i32
    %c0_i32_1 = arith.constant 0 : i32
    return %c0_i32, %c0_i32_0 : i32, i32
  }
  func.func @transform_5(%arg0: i32) -> (i32, i32) {
    %c0_i32 = arith.constant 0 : i32
    %c0_i32_0 = arith.constant 0 : i32
    %c0_i32_1 = arith.constant 0 : i32
    return %c0_i32, %c0_i32_0 : i32, i32
  }
  func.func @transform_6(%arg0: i32) -> (i32, i32) {
    %c0_i32 = arith.constant 0 : i32
    %c0_i32_0 = arith.constant 0 : i32
    %c0_i32_1 = arith.constant 0 : i32
    return %c0_i32, %c0_i32_0 : i32, i32
  }
  func.func @transform_7(%arg0: i32) -> (i32, i32) {
    %c0_i32 = arith.constant 0 : i32
    %c0_i32_0 = arith.constant 0 : i32
    return %c0_i32, %arg0 : i32, i32
  }
}

</mosaic_0001>

<llo_original>
// kernel: _forward.1
$region0: #{_forward.1}
  #allocation0 [shape = 'u32[]', space=smem, size = 0x4, offset = 0x4, fixed_abs, tag = 'smem constant byte address 0x4 - core index']
  #allocation1 [shape = 'u32[72,128]{1,0:T(1,128)}', space=vmem, size = 0x9000, scoped, tag = 'internal scratch']
  %s0 = inlined_call_operand.vmem [shape: bf16[16,128], index: 0, kind: input, shape index: {}]
  %s1 = inlined_call_operand.vmem [shape: bf16[128,16], index: 1, kind: input, shape index: {}]
  %s2 = inlined_call_operand.vmem [shape: bf16[128,128], index: 2, kind: input, shape index: {}]
  %s3 = inlined_call_operand.vmem [shape: bf16[128,128], index: 3, kind: input, shape index: {}]
  %s4 = inlined_call_operand.vmem [shape: bf16[128,128], index: 4, kind: input, shape index: {}]
  %s5 = inlined_call_operand.vmem [shape: bf16[16,128], index: 5, kind: input, shape index: {}]
  %s6 = inlined_call_operand.vmem [shape: f32[128,8], index: 6, kind: input, shape index: {}]
  %s7 = inlined_call_operand.vmem [shape: f32[1,128], index: 7, kind: output, shape index: {}]
  %s8 = sld [smem:[#allocation0]]
  $region38: #{_forward.1} parent=0
    _
  %s10 = ssub.s32 1, %s8
  %s11 = scalar_select 0, %s10, %s8
  // Predicated region
  $region2: #{_forward.1} parent=0 // pred_check
    _
  $region3: #{_forward.1} parent=0 // pred_check_branch
    %13 = sbr.rel (0) target = $region5
  $region4: #{_forward.1} parent=0 // pred_region
    _
  $region5: #{_forward.1} parent=0 // pred_fallthru
    _
  // Predicated region
  $region6: #{_forward.1} parent=0 // pred_check
    _
  $region7: #{_forward.1} parent=0 // pred_check_branch
    %15 = sbr.rel (0) target = $region9
  $region8: #{_forward.1} parent=0 // pred_region
    _
  $region9: #{_forward.1} parent=0 // pred_fallthru
    _
  // Predicated region
  $region10: #{_forward.1} parent=0 // pred_check
    _
  $region11: #{_forward.1} parent=0 // pred_check_branch
    %17 = sbr.rel (0) target = $region13
  $region12: #{_forward.1} parent=0 // pred_region
    _
  $region13: #{_forward.1} parent=0 // pred_fallthru
    _
  // Predicated region
  $region14: #{_forward.1} parent=0 // pred_check
    _
  $region15: #{_forward.1} parent=0 // pred_check_branch
    %19 = sbr.rel (0) target = $region17
  $region16: #{_forward.1} parent=0 // pred_region
    _
  $region17: #{_forward.1} parent=0 // pred_fallthru
    _
  // Predicated region
  $region18: #{_forward.1} parent=0 // pred_check
    _
  $region19: #{_forward.1} parent=0 // pred_check_branch
    %21 = sbr.rel (0) target = $region21
  $region20: #{_forward.1} parent=0 // pred_region
    _
  $region21: #{_forward.1} parent=0 // pred_fallthru
    _
  // Predicated region
  $region22: #{_forward.1} parent=0 // pred_check
    _
  $region23: #{_forward.1} parent=0 // pred_check_branch
    %23 = sbr.rel (0) target = $region25
  $region24: #{_forward.1} parent=0 // pred_region
    _
  $region25: #{_forward.1} parent=0 // pred_fallthru
    _
  // Predicated region
  $region26: #{_forward.1} parent=0 // pred_check
    _
  $region27: #{_forward.1} parent=0 // pred_check_branch
    %25 = sbr.rel (0) target = $region29
  $region28: #{_forward.1} parent=0 // pred_region
    _
  $region29: #{_forward.1} parent=0 // pred_fallthru
    _
  %v27 = vld [vmem:[%s6] sm:$0xff]
  %v28 = vld [vmem:[%s6 + $0x8] sm:$0xff]
  %v29 = vld [vmem:[%s6 + $0x10] sm:$0xff]
  %v30 = vld [vmem:[%s6 + $0x18] sm:$0xff]
  %v31 = vld [vmem:[%s6 + $0x20] sm:$0xff]
  %v32 = vld [vmem:[%s6 + $0x28] sm:$0xff]
  %v33 = vld [vmem:[%s6 + $0x30] sm:$0xff]
  %v34 = vld [vmem:[%s6 + $0x38] sm:$0xff]
  %v35 = vld [vmem:[%s6 + $0x40] sm:$0xff]
  %v36 = vld [vmem:[%s6 + $0x48] sm:$0xff]
  %v37 = vld [vmem:[%s6 + $0x50] sm:$0xff]
  %v38 = vld [vmem:[%s6 + $0x58] sm:$0xff]
  %v39 = vld [vmem:[%s6 + $0x60] sm:$0xff]
  %v40 = vld [vmem:[%s6 + $0x68] sm:$0xff]
  %v41 = vld [vmem:[%s6 + $0x70] sm:$0xff]
  %v42 = vld [vmem:[%s6 + $0x78] sm:$0xff]
  %v43 = vld [vmem:[%s0] sm:$0xf]
  %v44 = vld [vmem:[%s0 + $0x4] sm:$0xf]
  %v45 = vld [vmem:[%s1] sm:$0xf]
  %v46 = vld [vmem:[%s1 + $0x4] sm:$0xf]
  %v47 = vld [vmem:[%s1 + $0x8] sm:$0xf]
  %v48 = vld [vmem:[%s1 + $0xc] sm:$0xf]
  %v49 = vld [vmem:[%s1 + $0x10] sm:$0xf]
  %v50 = vld [vmem:[%s1 + $0x14] sm:$0xf]
  %v51 = vld [vmem:[%s1 + $0x18] sm:$0xf]
  %v52 = vld [vmem:[%s1 + $0x1c] sm:$0xf]
  %v53 = vld [vmem:[%s1 + $0x20] sm:$0xf]
  %v54 = vld [vmem:[%s1 + $0x24] sm:$0xf]
  %v55 = vld [vmem:[%s1 + $0x28] sm:$0xf]
  %v56 = vld [vmem:[%s1 + $0x2c] sm:$0xf]
  %v57 = vld [vmem:[%s1 + $0x30] sm:$0xf]
  %v58 = vld [vmem:[%s1 + $0x34] sm:$0xf]
  %v59 = vld [vmem:[%s1 + $0x38] sm:$0xf]
  %v60 = vld [vmem:[%s1 + $0x3c] sm:$0xf]
  %62 = vset.pattern.permute.xlu0 0
  %63 = vperm.xlu0 %62, %v27
  %v64 = vpop.permute.xlu0 %63
  %67 = vset.pattern.permute.xlu0 0
  %68 = vperm.xlu0 %67, %v28
  %v69 = vpop.permute.xlu0 %68
  %72 = vset.pattern.permute.xlu0 0
  %73 = vperm.xlu0 %72, %v29
  %v74 = vpop.permute.xlu0 %73
  %77 = vset.pattern.permute.xlu0 0
  %78 = vperm.xlu0 %77, %v30
  %v79 = vpop.permute.xlu0 %78
  %82 = vset.pattern.permute.xlu0 0
  %83 = vperm.xlu0 %82, %v31
  %v84 = vpop.permute.xlu0 %83
  %87 = vset.pattern.permute.xlu0 0
  %88 = vperm.xlu0 %87, %v32
  %v89 = vpop.permute.xlu0 %88
  %92 = vset.pattern.permute.xlu0 0
  %93 = vperm.xlu0 %92, %v33
  %v94 = vpop.permute.xlu0 %93
  %97 = vset.pattern.permute.xlu0 0
  %98 = vperm.xlu0 %97, %v34
  %v99 = vpop.permute.xlu0 %98
  %102 = vset.pattern.permute.xlu0 0
  %103 = vperm.xlu0 %102, %v35
  %v104 = vpop.permute.xlu0 %103
  %107 = vset.pattern.permute.xlu0 0
  %108 = vperm.xlu0 %107, %v36
  %v109 = vpop.permute.xlu0 %108
  %112 = vset.pattern.permute.xlu0 0
  %113 = vperm.xlu0 %112, %v37
  %v114 = vpop.permute.xlu0 %113
  %117 = vset.pattern.permute.xlu0 0
  %118 = vperm.xlu0 %117, %v38
  %v119 = vpop.permute.xlu0 %118
  %122 = vset.pattern.permute.xlu0 0
  %123 = vperm.xlu0 %122, %v39
  %v124 = vpop.permute.xlu0 %123
  %127 = vset.pattern.permute.xlu0 0
  %128 = vperm.xlu0 %127, %v40
  %v129 = vpop.permute.xlu0 %128
  %132 = vset.pattern.permute.xlu0 0
  %133 = vperm.xlu0 %132, %v41
  %v134 = vpop.permute.xlu0 %133
  %137 = vset.pattern.permute.xlu0 0
  %138 = vperm.xlu0 %137, %v42
  %v139 = vpop.permute.xlu0 %138
  %v157 = vunpack.c.l.b16 %v45
  %v158 = vunpack.c.l.b16 %v46
  %v159 = vunpack.c.l.b16 %v47
  %v160 = vunpack.c.l.b16 %v48
  %v161 = vunpack.c.l.b16 %v49
  %v162 = vunpack.c.l.b16 %v50
  %v163 = vunpack.c.l.b16 %v51
  %v164 = vunpack.c.l.b16 %v52
  %v165 = vunpack.c.l.b16 %v53
  %v166 = vunpack.c.l.b16 %v54
  %v167 = vunpack.c.l.b16 %v55
  %v168 = vunpack.c.l.b16 %v56
  %v169 = vunpack.c.l.b16 %v57
  %v170 = vunpack.c.l.b16 %v58
  %v171 = vunpack.c.l.b16 %v59
  %v172 = vunpack.c.l.b16 %v60
  %v173 = vpack.c.b16 %v158, %v157
  %v174 = vpack.c.b16 %v160, %v159
  %v175 = vpack.c.b16 %v162, %v161
  %v176 = vpack.c.b16 %v164, %v163
  %v177 = vpack.c.b16 %v166, %v165
  %v178 = vpack.c.b16 %v168, %v167
  %v179 = vpack.c.b16 %v170, %v169
  %v180 = vpack.c.b16 %v172, %v171
  %v183 = vunpack.c.l.b16 %v43
  %v184 = vunpack.c.l.b16 %v44
  %v185 = vpack.c.b16 %v184, %v183
  %vm187 = vcmask 130048
  %v189 = vsel %vm187, %v173, 0
  %v192 = vsel %vm187, %v174, 0
  %v195 = vsel %vm187, %v175, 0
  %v198 = vsel %vm187, %v176, 0
  %v201 = vsel %vm187, %v177, 0
  %v204 = vsel %vm187, %v178, 0
  %v207 = vsel %vm187, %v179, 0
  %v210 = vsel %vm187, %v180, 0
  %212 = vmatpush.bf16.msra.mxu0 0
  %213 = vmatpush.bf16.msra.mxu0 0
  %214 = vmatpush.bf16.msra.mxu0 0
  %215 = vmatpush.bf16.msra.mxu0 0
  %216 = vmatpush.bf16.msra.mxu0 0
  %217 = vmatpush.bf16.msra.mxu0 0
  %218 = vmatpush.bf16.msra.mxu0 0
  %219 = vmatpush.bf16.msra.mxu0 %v185
  %220 = vmatmul.bf16.gmra.mxu0 %v189
  %v221 = vpop.f32.mrf.mxu0
  %v222 = vadd.f32 %v64, %v221
  %v223 = vpop.f32.mrf.mxu0
  %v224 = vadd.f32 %v69, %v223
  %225 = vmatmul.bf16.gmra.mxu0 %v192
  %v226 = vpop.f32.mrf.mxu0
  %v227 = vadd.f32 %v74, %v226
  %v228 = vpop.f32.mrf.mxu0
  %v229 = vadd.f32 %v79, %v228
  %230 = vmatmul.bf16.gmra.mxu0 %v195
  %v231 = vpop.f32.mrf.mxu0
  %v232 = vadd.f32 %v84, %v231
  %v233 = vpop.f32.mrf.mxu0
  %v234 = vadd.f32 %v89, %v233
  %235 = vmatmul.bf16.gmra.mxu0 %v198
  %v236 = vpop.f32.mrf.mxu0
  %v237 = vadd.f32 %v94, %v236
  %v238 = vpop.f32.mrf.mxu0
  %v239 = vadd.f32 %v99, %v238
  %240 = vmatmul.bf16.gmra.mxu0 %v201
  %v241 = vpop.f32.mrf.mxu0
  %v242 = vadd.f32 %v104, %v241
  %v243 = vpop.f32.mrf.mxu0
  %v244 = vadd.f32 %v109, %v243
  %245 = vmatmul.bf16.gmra.mxu0 %v204
  %v246 = vpop.f32.mrf.mxu0
  %v247 = vadd.f32 %v114, %v246
  %v248 = vpop.f32.mrf.mxu0
  %v249 = vadd.f32 %v119, %v248
  %250 = vmatmul.bf16.gmra.mxu0 %v207
  %v251 = vpop.f32.mrf.mxu0
  %v252 = vadd.f32 %v124, %v251
  %v253 = vpop.f32.mrf.mxu0
  %v254 = vadd.f32 %v129, %v253
  %255 = vmatmul.bf16.gmra.mxu0 %v210
  %v256 = vpop.f32.mrf.mxu0
  %v257 = vadd.f32 %v134, %v256
  %v258 = vpop.f32.mrf.mxu0
  %v259 = vadd.f32 %v139, %v258
  %260 = vdwg.mxu0
  %v261 = vmul.f32 %v222, 0.01
  %v262 = vmul.f32 %v224, 0.01
  %v263 = vmul.f32 %v227, 0.01
  %v264 = vmul.f32 %v229, 0.01
  %v265 = vmul.f32 %v232, 0.01
  %v266 = vmul.f32 %v234, 0.01
  %v267 = vmul.f32 %v237, 0.01
  %v268 = vmul.f32 %v239, 0.01
  %v269 = vmul.f32 %v242, 0.01
  %v270 = vmul.f32 %v244, 0.01
  %v271 = vmul.f32 %v247, 0.01
  %v272 = vmul.f32 %v249, 0.01
  %v273 = vmul.f32 %v252, 0.01
  %v274 = vmul.f32 %v254, 0.01
  %v275 = vmul.f32 %v257, 0.01
  %v276 = vmul.f32 %v259, 0.01
  %v277 = vmax.f32 %v222, %v261
  %v278 = vmax.f32 %v224, %v262
  %v279 = vmax.f32 %v227, %v263
  %v280 = vmax.f32 %v229, %v264
  %v281 = vmax.f32 %v232, %v265
  %v282 = vmax.f32 %v234, %v266
  %v283 = vmax.f32 %v237, %v267
  %v284 = vmax.f32 %v239, %v268
  %v285 = vmax.f32 %v242, %v269
  %v286 = vmax.f32 %v244, %v270
  %v287 = vmax.f32 %v247, %v271
  %v288 = vmax.f32 %v249, %v272
  %v289 = vmax.f32 %v252, %v273
  %v290 = vmax.f32 %v254, %v274
  %v291 = vmax.f32 %v257, %v275
  %v292 = vmax.f32 %v259, %v276
  %v293 = vpack.c.bf16 %v278, %v277
  %v294 = vpack.c.bf16 %v280, %v279
  %v295 = vpack.c.bf16 %v282, %v281
  %v296 = vpack.c.bf16 %v284, %v283
  %v297 = vpack.c.bf16 %v286, %v285
  %v298 = vpack.c.bf16 %v288, %v287
  %v299 = vpack.c.bf16 %v290, %v289
  %v300 = vpack.c.bf16 %v292, %v291
  %v301 = vld [vmem:[%s2] sm:$0xf]
  %v302 = vld [vmem:[%s2 + $0x4] sm:$0xf]
  %v303 = vld [vmem:[%s2 + $0x8] sm:$0xf]
  %v304 = vld [vmem:[%s2 + $0xc] sm:$0xf]
  %v305 = vld [vmem:[%s2 + $0x10] sm:$0xf]
  %v306 = vld [vmem:[%s2 + $0x14] sm:$0xf]
  %v307 = vld [vmem:[%s2 + $0x18] sm:$0xf]
  %v308 = vld [vmem:[%s2 + $0x1c] sm:$0xf]
  %v309 = vld [vmem:[%s2 + $0x20] sm:$0xf]
  %v310 = vld [vmem:[%s2 + $0x24] sm:$0xf]
  %v311 = vld [vmem:[%s2 + $0x28] sm:$0xf]
  %v312 = vld [vmem:[%s2 + $0x2c] sm:$0xf]
  %v313 = vld [vmem:[%s2 + $0x30] sm:$0xf]
  %v314 = vld [vmem:[%s2 + $0x34] sm:$0xf]
  %v315 = vld [vmem:[%s2 + $0x38] sm:$0xf]
  %v316 = vld [vmem:[%s2 + $0x3c] sm:$0xf]
  %317 = vset.pattern.permute.xlu0 1
  %318 = vperm.xlu0 %317, %v27
  %v319 = vpop.permute.xlu0 %318
  %321 = vset.pattern.permute.xlu0 1
  %322 = vperm.xlu0 %321, %v28
  %v323 = vpop.permute.xlu0 %322
  %325 = vset.pattern.permute.xlu0 1
  %326 = vperm.xlu0 %325, %v29
  %v327 = vpop.permute.xlu0 %326
  %329 = vset.pattern.permute.xlu0 1
  %330 = vperm.xlu0 %329, %v30
  %v331 = vpop.permute.xlu0 %330
  %333 = vset.pattern.permute.xlu0 1
  %334 = vperm.xlu0 %333, %v31
  %v335 = vpop.permute.xlu0 %334
  %337 = vset.pattern.permute.xlu0 1
  %338 = vperm.xlu0 %337, %v32
  %v339 = vpop.permute.xlu0 %338
  %341 = vset.pattern.permute.xlu0 1
  %342 = vperm.xlu0 %341, %v33
  %v343 = vpop.permute.xlu0 %342
  %345 = vset.pattern.permute.xlu0 1
  %346 = vperm.xlu0 %345, %v34
  %v347 = vpop.permute.xlu0 %346
  %349 = vset.pattern.permute.xlu0 1
  %350 = vperm.xlu0 %349, %v35
  %v351 = vpop.permute.xlu0 %350
  %353 = vset.pattern.permute.xlu0 1
  %354 = vperm.xlu0 %353, %v36
  %v355 = vpop.permute.xlu0 %354
  %357 = vset.pattern.permute.xlu0 1
  %358 = vperm.xlu0 %357, %v37
  %v359 = vpop.permute.xlu0 %358
  %361 = vset.pattern.permute.xlu0 1
  %362 = vperm.xlu0 %361, %v38
  %v363 = vpop.permute.xlu0 %362
  %365 = vset.pattern.permute.xlu0 1
  %366 = vperm.xlu0 %365, %v39
  %v367 = vpop.permute.xlu0 %366
  %369 = vset.pattern.permute.xlu0 1
  %370 = vperm.xlu0 %369, %v40
  %v371 = vpop.permute.xlu0 %370
  %373 = vset.pattern.permute.xlu0 1
  %374 = vperm.xlu0 %373, %v41
  %v375 = vpop.permute.xlu0 %374
  %377 = vset.pattern.permute.xlu0 1
  %378 = vperm.xlu0 %377, %v42
  %v379 = vpop.permute.xlu0 %378
  %v397 = vunpack.c.l.b16 %v301
  %v398 = vunpack.c.l.b16 %v302
  %v399 = vunpack.c.l.b16 %v303
  %v400 = vunpack.c.l.b16 %v304
  %v401 = vunpack.c.l.b16 %v305
  %v402 = vunpack.c.l.b16 %v306
  %v403 = vunpack.c.l.b16 %v307
  %v404 = vunpack.c.l.b16 %v308
  %v405 = vunpack.c.l.b16 %v309
  %v406 = vunpack.c.l.b16 %v310
  %v407 = vunpack.c.l.b16 %v311
  %v408 = vunpack.c.l.b16 %v312
  %v409 = vunpack.c.l.b16 %v313
  %v410 = vunpack.c.l.b16 %v314
  %v411 = vunpack.c.l.b16 %v315
  %v412 = vunpack.c.l.b16 %v316
  %v413 = vpack.c.b16 %v398, %v397
  %v414 = vpack.c.b16 %v400, %v399
  %v415 = vpack.c.b16 %v402, %v401
  %v416 = vpack.c.b16 %v404, %v403
  %v417 = vpack.c.b16 %v406, %v405
  %v418 = vpack.c.b16 %v408, %v407
  %v419 = vpack.c.b16 %v410, %v409
  %v420 = vpack.c.b16 %v412, %v411
  %429 = vmatpush.bf16.msra.mxu0 %v300
  %430 = vmatpush.bf16.msra.mxu0 %v299
  %431 = vmatpush.bf16.msra.mxu0 %v298
  %432 = vmatpush.bf16.msra.mxu0 %v297
  %433 = vmatpush.bf16.msra.mxu0 %v296
  %434 = vmatpush.bf16.msra.mxu0 %v295
  %435 = vmatpush.bf16.msra.mxu0 %v294
  %436 = vmatpush.bf16.msra.mxu0 %v293
  %437 = vmatmul.bf16.gmra.mxu0 %v413
  %v438 = vpop.f32.mrf.mxu0
  %v439 = vadd.f32 %v319, %v438
  %v440 = vpop.f32.mrf.mxu0
  %v441 = vadd.f32 %v323, %v440
  %442 = vmatmul.bf16.gmra.mxu0 %v414
  %v443 = vpop.f32.mrf.mxu0
  %v444 = vadd.f32 %v327, %v443
  %v445 = vpop.f32.mrf.mxu0
  %v446 = vadd.f32 %v331, %v445
  %447 = vmatmul.bf16.gmra.mxu0 %v415
  %v448 = vpop.f32.mrf.mxu0
  %v449 = vadd.f32 %v335, %v448
  %v450 = vpop.f32.mrf.mxu0
  %v451 = vadd.f32 %v339, %v450
  %452 = vmatmul.bf16.gmra.mxu0 %v416
  %v453 = vpop.f32.mrf.mxu0
  %v454 = vadd.f32 %v343, %v453
  %v455 = vpop.f32.mrf.mxu0
  %v456 = vadd.f32 %v347, %v455
  %457 = vmatmul.bf16.gmra.mxu0 %v417
  %v458 = vpop.f32.mrf.mxu0
  %v459 = vadd.f32 %v351, %v458
  %v460 = vpop.f32.mrf.mxu0
  %v461 = vadd.f32 %v355, %v460
  %462 = vmatmul.bf16.gmra.mxu0 %v418
  %v463 = vpop.f32.mrf.mxu0
  %v464 = vadd.f32 %v359, %v463
  %v465 = vpop.f32.mrf.mxu0
  %v466 = vadd.f32 %v363, %v465
  %467 = vmatmul.bf16.gmra.mxu0 %v419
  %v468 = vpop.f32.mrf.mxu0
  %v469 = vadd.f32 %v367, %v468
  %v470 = vpop.f32.mrf.mxu0
  %v471 = vadd.f32 %v371, %v470
  %472 = vmatmul.bf16.gmra.mxu0 %v420
  %v473 = vpop.f32.mrf.mxu0
  %v474 = vadd.f32 %v375, %v473
  %v475 = vpop.f32.mrf.mxu0
  %v476 = vadd.f32 %v379, %v475
  %477 = vdwg.mxu0
  %v478 = vmul.f32 %v439, 0.01
  %v479 = vmul.f32 %v441, 0.01
  %v480 = vmul.f32 %v444, 0.01
  %v481 = vmul.f32 %v446, 0.01
  %v482 = vmul.f32 %v449, 0.01
  %v483 = vmul.f32 %v451, 0.01
  %v484 = vmul.f32 %v454, 0.01
  %v485 = vmul.f32 %v456, 0.01
  %v486 = vmul.f32 %v459, 0.01
  %v487 = vmul.f32 %v461, 0.01
  %v488 = vmul.f32 %v464, 0.01
  %v489 = vmul.f32 %v466, 0.01
  %v490 = vmul.f32 %v469, 0.01
  %v491 = vmul.f32 %v471, 0.01
  %v492 = vmul.f32 %v474, 0.01
  %v493 = vmul.f32 %v476, 0.01
  %v494 = vmax.f32 %v439, %v478
  %v495 = vmax.f32 %v441, %v479
  %v496 = vmax.f32 %v444, %v480
  %v497 = vmax.f32 %v446, %v481
  %v498 = vmax.f32 %v449, %v482
  %v499 = vmax.f32 %v451, %v483
  %v500 = vmax.f32 %v454, %v484
  %v501 = vmax.f32 %v456, %v485
  %v502 = vmax.f32 %v459, %v486
  %v503 = vmax.f32 %v461, %v487
  %v504 = vmax.f32 %v464, %v488
  %v505 = vmax.f32 %v466, %v489
  %v506 = vmax.f32 %v469, %v490
  %v507 = vmax.f32 %v471, %v491
  %v508 = vmax.f32 %v474, %v492
  %v509 = vmax.f32 %v476, %v493
  %v510 = vpack.c.bf16 %v495, %v494
  %v511 = vpack.c.bf16 %v497, %v496
  %v512 = vpack.c.bf16 %v499, %v498
  %v513 = vpack.c.bf16 %v501, %v500
  %v514 = vpack.c.bf16 %v503, %v502
  %v515 = vpack.c.bf16 %v505, %v504
  %v516 = vpack.c.bf16 %v507, %v506
  %v517 = vpack.c.bf16 %v509, %v508
  %v518 = vld [vmem:[%s3] sm:$0xf]
  %v519 = vld [vmem:[%s3 + $0x4] sm:$0xf]
  %v520 = vld [vmem:[%s3 + $0x8] sm:$0xf]
  %v521 = vld [vmem:[%s3 + $0xc] sm:$0xf]
  %v522 = vld [vmem:[%s3 + $0x10] sm:$0xf]
  %v523 = vld [vmem:[%s3 + $0x14] sm:$0xf]
  %v524 = vld [vmem:[%s3 + $0x18] sm:$0xf]
  %v525 = vld [vmem:[%s3 + $0x1c] sm:$0xf]
  %v526 = vld [vmem:[%s3 + $0x20] sm:$0xf]
  %v527 = vld [vmem:[%s3 + $0x24] sm:$0xf]
  %v528 = vld [vmem:[%s3 + $0x28] sm:$0xf]
  %v529 = vld [vmem:[%s3 + $0x2c] sm:$0xf]
  %v530 = vld [vmem:[%s3 + $0x30] sm:$0xf]
  %v531 = vld [vmem:[%s3 + $0x34] sm:$0xf]
  %v532 = vld [vmem:[%s3 + $0x38] sm:$0xf]
  %v533 = vld [vmem:[%s3 + $0x3c] sm:$0xf]
  %534 = vset.pattern.permute.xlu0 2
  %535 = vperm.xlu0 %534, %v27
  %v536 = vpop.permute.xlu0 %535
  %538 = vset.pattern.permute.xlu0 2
  %539 = vperm.xlu0 %538, %v28
  %v540 = vpop.permute.xlu0 %539
  %542 = vset.pattern.permute.xlu0 2
  %543 = vperm.xlu0 %542, %v29
  %v544 = vpop.permute.xlu0 %543
  %546 = vset.pattern.permute.xlu0 2
  %547 = vperm.xlu0 %546, %v30
  %v548 = vpop.permute.xlu0 %547
  %550 = vset.pattern.permute.xlu0 2
  %551 = vperm.xlu0 %550, %v31
  %v552 = vpop.permute.xlu0 %551
  %554 = vset.pattern.permute.xlu0 2
  %555 = vperm.xlu0 %554, %v32
  %v556 = vpop.permute.xlu0 %555
  %558 = vset.pattern.permute.xlu0 2
  %559 = vperm.xlu0 %558, %v33
  %v560 = vpop.permute.xlu0 %559
  %562 = vset.pattern.permute.xlu0 2
  %563 = vperm.xlu0 %562, %v34
  %v564 = vpop.permute.xlu0 %563
  %566 = vset.pattern.permute.xlu0 2
  %567 = vperm.xlu0 %566, %v35
  %v568 = vpop.permute.xlu0 %567
  %570 = vset.pattern.permute.xlu0 2
  %571 = vperm.xlu0 %570, %v36
  %v572 = vpop.permute.xlu0 %571
  %574 = vset.pattern.permute.xlu0 2
  %575 = vperm.xlu0 %574, %v37
  %v576 = vpop.permute.xlu0 %575
  %578 = vset.pattern.permute.xlu0 2
  %579 = vperm.xlu0 %578, %v38
  %v580 = vpop.permute.xlu0 %579
  %582 = vset.pattern.permute.xlu0 2
  %583 = vperm.xlu0 %582, %v39
  %v584 = vpop.permute.xlu0 %583
  %586 = vset.pattern.permute.xlu0 2
  %587 = vperm.xlu0 %586, %v40
  %v588 = vpop.permute.xlu0 %587
  %590 = vset.pattern.permute.xlu0 2
  %591 = vperm.xlu0 %590, %v41
  %v592 = vpop.permute.xlu0 %591
  %594 = vset.pattern.permute.xlu0 2
  %595 = vperm.xlu0 %594, %v42
  %v596 = vpop.permute.xlu0 %595
  %v614 = vunpack.c.l.b16 %v518
  %v615 = vunpack.c.l.b16 %v519
  %v616 = vunpack.c.l.b16 %v520
  %v617 = vunpack.c.l.b16 %v521
  %v618 = vunpack.c.l.b16 %v522
  %v619 = vunpack.c.l.b16 %v523
  %v620 = vunpack.c.l.b16 %v524
  %v621 = vunpack.c.l.b16 %v525
  %v622 = vunpack.c.l.b16 %v526
  %v623 = vunpack.c.l.b16 %v527
  %v624 = vunpack.c.l.b16 %v528
  %v625 = vunpack.c.l.b16 %v529
  %v626 = vunpack.c.l.b16 %v530
  %v627 = vunpack.c.l.b16 %v531
  %v628 = vunpack.c.l.b16 %v532
  %v629 = vunpack.c.l.b16 %v533
  %v630 = vpack.c.b16 %v615, %v614
  %v631 = vpack.c.b16 %v617, %v616
  %v632 = vpack.c.b16 %v619, %v618
  %v633 = vpack.c.b16 %v621, %v620
  %v634 = vpack.c.b16 %v623, %v622
  %v635 = vpack.c.b16 %v625, %v624
  %v636 = vpack.c.b16 %v627, %v626
  %v637 = vpack.c.b16 %v629, %v628
  %646 = vmatpush.bf16.msra.mxu0 %v517
  %647 = vmatpush.bf16.msra.mxu0 %v516
  %648 = vmatpush.bf16.msra.mxu0 %v515
  %649 = vmatpush.bf16.msra.mxu0 %v514
  %650 = vmatpush.bf16.msra.mxu0 %v513
  %651 = vmatpush.bf16.msra.mxu0 %v512
  %652 = vmatpush.bf16.msra.mxu0 %v511
  %653 = vmatpush.bf16.msra.mxu0 %v510
  %654 = vmatmul.bf16.gmra.mxu0 %v630
  %v655 = vpop.f32.mrf.mxu0
  %v656 = vadd.f32 %v536, %v655
  %v657 = vpop.f32.mrf.mxu0
  %v658 = vadd.f32 %v540, %v657
  %659 = vmatmul.bf16.gmra.mxu0 %v631
  %v660 = vpop.f32.mrf.mxu0
  %v661 = vadd.f32 %v544, %v660
  %v662 = vpop.f32.mrf.mxu0
  %v663 = vadd.f32 %v548, %v662
  %664 = vmatmul.bf16.gmra.mxu0 %v632
  %v665 = vpop.f32.mrf.mxu0
  %v666 = vadd.f32 %v552, %v665
  %v667 = vpop.f32.mrf.mxu0
  %v668 = vadd.f32 %v556, %v667
  %669 = vmatmul.bf16.gmra.mxu0 %v633
  %v670 = vpop.f32.mrf.mxu0
  %v671 = vadd.f32 %v560, %v670
  %v672 = vpop.f32.mrf.mxu0
  %v673 = vadd.f32 %v564, %v672
  %674 = vmatmul.bf16.gmra.mxu0 %v634
  %v675 = vpop.f32.mrf.mxu0
  %v676 = vadd.f32 %v568, %v675
  %v677 = vpop.f32.mrf.mxu0
  %v678 = vadd.f32 %v572, %v677
  %679 = vmatmul.bf16.gmra.mxu0 %v635
  %v680 = vpop.f32.mrf.mxu0
  %v681 = vadd.f32 %v576, %v680
  %v682 = vpop.f32.mrf.mxu0
  %v683 = vadd.f32 %v580, %v682
  %684 = vmatmul.bf16.gmra.mxu0 %v636
  %v685 = vpop.f32.mrf.mxu0
  %v686 = vadd.f32 %v584, %v685
  %v687 = vpop.f32.mrf.mxu0
  %v688 = vadd.f32 %v588, %v687
  %689 = vmatmul.bf16.gmra.mxu0 %v637
  %v690 = vpop.f32.mrf.mxu0
  %v691 = vadd.f32 %v592, %v690
  %v692 = vpop.f32.mrf.mxu0
  %v693 = vadd.f32 %v596, %v692
  %694 = vdwg.mxu0
  %v695 = vmul.f32 %v656, 0.01
  %v696 = vmul.f32 %v658, 0.01
  %v697 = vmul.f32 %v661, 0.01
  %v698 = vmul.f32 %v663, 0.01
  %v699 = vmul.f32 %v666, 0.01
  %v700 = vmul.f32 %v668, 0.01
  %v701 = vmul.f32 %v671, 0.01
  %v702 = vmul.f32 %v673, 0.01
  %v703 = vmul.f32 %v676, 0.01
  %v704 = vmul.f32 %v678, 0.01
  %v705 = vmul.f32 %v681, 0.01
  %v706 = vmul.f32 %v683, 0.01
  %v707 = vmul.f32 %v686, 0.01
  %v708 = vmul.f32 %v688, 0.01
  %v709 = vmul.f32 %v691, 0.01
  %v710 = vmul.f32 %v693, 0.01
  %v711 = vmax.f32 %v656, %v695
  %v712 = vmax.f32 %v658, %v696
  %v713 = vmax.f32 %v661, %v697
  %v714 = vmax.f32 %v663, %v698
  %v715 = vmax.f32 %v666, %v699
  %v716 = vmax.f32 %v668, %v700
  %v717 = vmax.f32 %v671, %v701
  %v718 = vmax.f32 %v673, %v702
  %v719 = vmax.f32 %v676, %v703
  %v720 = vmax.f32 %v678, %v704
  %v721 = vmax.f32 %v681, %v705
  %v722 = vmax.f32 %v683, %v706
  %v723 = vmax.f32 %v686, %v707
  %v724 = vmax.f32 %v688, %v708
  %v725 = vmax.f32 %v691, %v709
  %v726 = vmax.f32 %v693, %v710
  %v727 = vpack.c.bf16 %v712, %v711
  %v728 = vpack.c.bf16 %v714, %v713
  %v729 = vpack.c.bf16 %v716, %v715
  %v730 = vpack.c.bf16 %v718, %v717
  %v731 = vpack.c.bf16 %v720, %v719
  %v732 = vpack.c.bf16 %v722, %v721
  %v733 = vpack.c.bf16 %v724, %v723
  %v734 = vpack.c.bf16 %v726, %v725
  %v735 = vld [vmem:[%s4] sm:$0xf]
  %v736 = vld [vmem:[%s4 + $0x4] sm:$0xf]
  %v737 = vld [vmem:[%s4 + $0x8] sm:$0xf]
  %v738 = vld [vmem:[%s4 + $0xc] sm:$0xf]
  %v739 = vld [vmem:[%s4 + $0x10] sm:$0xf]
  %v740 = vld [vmem:[%s4 + $0x14] sm:$0xf]
  %v741 = vld [vmem:[%s4 + $0x18] sm:$0xf]
  %v742 = vld [vmem:[%s4 + $0x1c] sm:$0xf]
  %v743 = vld [vmem:[%s4 + $0x20] sm:$0xf]
  %v744 = vld [vmem:[%s4 + $0x24] sm:$0xf]
  %v745 = vld [vmem:[%s4 + $0x28] sm:$0xf]
  %v746 = vld [vmem:[%s4 + $0x2c] sm:$0xf]
  %v747 = vld [vmem:[%s4 + $0x30] sm:$0xf]
  %v748 = vld [vmem:[%s4 + $0x34] sm:$0xf]
  %v749 = vld [vmem:[%s4 + $0x38] sm:$0xf]
  %v750 = vld [vmem:[%s4 + $0x3c] sm:$0xf]
  %751 = vset.pattern.permute.xlu0 3
  %752 = vperm.xlu0 %751, %v27
  %v753 = vpop.permute.xlu0 %752
  %755 = vset.pattern.permute.xlu0 3
  %756 = vperm.xlu0 %755, %v28
  %v757 = vpop.permute.xlu0 %756
  %759 = vset.pattern.permute.xlu0 3
  %760 = vperm.xlu0 %759, %v29
  %v761 = vpop.permute.xlu0 %760
  %763 = vset.pattern.permute.xlu0 3
  %764 = vperm.xlu0 %763, %v30
  %v765 = vpop.permute.xlu0 %764
  %767 = vset.pattern.permute.xlu0 3
  %768 = vperm.xlu0 %767, %v31
  %v769 = vpop.permute.xlu0 %768
  %771 = vset.pattern.permute.xlu0 3
  %772 = vperm.xlu0 %771, %v32
  %v773 = vpop.permute.xlu0 %772
  %775 = vset.pattern.permute.xlu0 3
  %776 = vperm.xlu0 %775, %v33
  %v777 = vpop.permute.xlu0 %776
  %779 = vset.pattern.permute.xlu0 3
  %780 = vperm.xlu0 %779, %v34
  %v781 = vpop.permute.xlu0 %780
  %783 = vset.pattern.permute.xlu0 3
  %784 = vperm.xlu0 %783, %v35
  %v785 = vpop.permute.xlu0 %784
  %787 = vset.pattern.permute.xlu0 3
  %788 = vperm.xlu0 %787, %v36
  %v789 = vpop.permute.xlu0 %788
  %791 = vset.pattern.permute.xlu0 3
  %792 = vperm.xlu0 %791, %v37
  %v793 = vpop.permute.xlu0 %792
  %795 = vset.pattern.permute.xlu0 3
  %796 = vperm.xlu0 %795, %v38
  %v797 = vpop.permute.xlu0 %796
  %799 = vset.pattern.permute.xlu0 3
  %800 = vperm.xlu0 %799, %v39
  %v801 = vpop.permute.xlu0 %800
  %803 = vset.pattern.permute.xlu0 3
  %804 = vperm.xlu0 %803, %v40
  %v805 = vpop.permute.xlu0 %804
  %807 = vset.pattern.permute.xlu0 3
  %808 = vperm.xlu0 %807, %v41
  %v809 = vpop.permute.xlu0 %808
  %811 = vset.pattern.permute.xlu0 3
  %812 = vperm.xlu0 %811, %v42
  %v813 = vpop.permute.xlu0 %812
  %v831 = vunpack.c.l.b16 %v735
  %v832 = vunpack.c.l.b16 %v736
  %v833 = vunpack.c.l.b16 %v737
  %v834 = vunpack.c.l.b16 %v738
  %v835 = vunpack.c.l.b16 %v739
  %v836 = vunpack.c.l.b16 %v740
  %v837 = vunpack.c.l.b16 %v741
  %v838 = vunpack.c.l.b16 %v742
  %v839 = vunpack.c.l.b16 %v743
  %v840 = vunpack.c.l.b16 %v744
  %v841 = vunpack.c.l.b16 %v745
  %v842 = vunpack.c.l.b16 %v746
  %v843 = vunpack.c.l.b16 %v747
  %v844 = vunpack.c.l.b16 %v748
  %v845 = vunpack.c.l.b16 %v749
  %v846 = vunpack.c.l.b16 %v750
  %v847 = vpack.c.b16 %v832, %v831
  %v848 = vpack.c.b16 %v834, %v833
  %v849 = vpack.c.b16 %v836, %v835
  %v850 = vpack.c.b16 %v838, %v837
  %v851 = vpack.c.b16 %v840, %v839
  %v852 = vpack.c.b16 %v842, %v841
  %v853 = vpack.c.b16 %v844, %v843
  %v854 = vpack.c.b16 %v846, %v845
  %863 = vmatpush.bf16.msra.mxu0 %v734
  %864 = vmatpush.bf16.msra.mxu0 %v733
  %865 = vmatpush.bf16.msra.mxu0 %v732
  %866 = vmatpush.bf16.msra.mxu0 %v731
  %867 = vmatpush.bf16.msra.mxu0 %v730
  %868 = vmatpush.bf16.msra.mxu0 %v729
  %869 = vmatpush.bf16.msra.mxu0 %v728
  %870 = vmatpush.bf16.msra.mxu0 %v727
  %871 = vmatmul.bf16.gmra.mxu0 %v847
  %v872 = vpop.f32.mrf.mxu0
  %v873 = vadd.f32 %v753, %v872
  %v874 = vpop.f32.mrf.mxu0
  %v875 = vadd.f32 %v757, %v874
  %876 = vmatmul.bf16.gmra.mxu0 %v848
  %v877 = vpop.f32.mrf.mxu0
  %v878 = vadd.f32 %v761, %v877
  %v879 = vpop.f32.mrf.mxu0
  %v880 = vadd.f32 %v765, %v879
  %881 = vmatmul.bf16.gmra.mxu0 %v849
  %v882 = vpop.f32.mrf.mxu0
  %v883 = vadd.f32 %v769, %v882
  %v884 = vpop.f32.mrf.mxu0
  %v885 = vadd.f32 %v773, %v884
  %886 = vmatmul.bf16.gmra.mxu0 %v850
  %v887 = vpop.f32.mrf.mxu0
  %v888 = vadd.f32 %v777, %v887
  %v889 = vpop.f32.mrf.mxu0
  %v890 = vadd.f32 %v781, %v889
  %891 = vmatmul.bf16.gmra.mxu0 %v851
  %v892 = vpop.f32.mrf.mxu0
  %v893 = vadd.f32 %v785, %v892
  %v894 = vpop.f32.mrf.mxu0
  %v895 = vadd.f32 %v789, %v894
  %896 = vmatmul.bf16.gmra.mxu0 %v852
  %v897 = vpop.f32.mrf.mxu0
  %v898 = vadd.f32 %v793, %v897
  %v899 = vpop.f32.mrf.mxu0
  %v900 = vadd.f32 %v797, %v899
  %901 = vmatmul.bf16.gmra.mxu0 %v853
  %v902 = vpop.f32.mrf.mxu0
  %v903 = vadd.f32 %v801, %v902
  %v904 = vpop.f32.mrf.mxu0
  %v905 = vadd.f32 %v805, %v904
  %906 = vmatmul.bf16.gmra.mxu0 %v854
  %v907 = vpop.f32.mrf.mxu0
  %v908 = vadd.f32 %v809, %v907
  %v909 = vpop.f32.mrf.mxu0
  %v910 = vadd.f32 %v813, %v909
  %911 = vdwg.mxu0
  %v912 = vmul.f32 %v873, 0.01
  %v913 = vmul.f32 %v875, 0.01
  %v914 = vmul.f32 %v878, 0.01
  %v915 = vmul.f32 %v880, 0.01
  %v916 = vmul.f32 %v883, 0.01
  %v917 = vmul.f32 %v885, 0.01
  %v918 = vmul.f32 %v888, 0.01
  %v919 = vmul.f32 %v890, 0.01
  %v920 = vmul.f32 %v893, 0.01
  %v921 = vmul.f32 %v895, 0.01
  %v922 = vmul.f32 %v898, 0.01
  %v923 = vmul.f32 %v900, 0.01
  %v924 = vmul.f32 %v903, 0.01
  %v925 = vmul.f32 %v905, 0.01
  %v926 = vmul.f32 %v908, 0.01
  %v927 = vmul.f32 %v910, 0.01
  %v928 = vmax.f32 %v873, %v912
  %v929 = vmax.f32 %v875, %v913
  %v930 = vmax.f32 %v878, %v914
  %v931 = vmax.f32 %v880, %v915
  %v932 = vmax.f32 %v883, %v916
  %v933 = vmax.f32 %v885, %v917
  %v934 = vmax.f32 %v888, %v918
  %v935 = vmax.f32 %v890, %v919
  %v936 = vmax.f32 %v893, %v920
  %v937 = vmax.f32 %v895, %v921
  %v938 = vmax.f32 %v898, %v922
  %v939 = vmax.f32 %v900, %v923
  %v940 = vmax.f32 %v903, %v924
  %v941 = vmax.f32 %v905, %v925
  %v942 = vmax.f32 %v908, %v926
  %v943 = vmax.f32 %v910, %v927
  %v944 = vpack.c.bf16 %v929, %v928
  %v945 = vpack.c.bf16 %v931, %v930
  %v946 = vpack.c.bf16 %v933, %v932
  %v947 = vpack.c.bf16 %v935, %v934
  %v948 = vpack.c.bf16 %v937, %v936
  %v949 = vpack.c.bf16 %v939, %v938
  %v950 = vpack.c.bf16 %v941, %v940
  %v951 = vpack.c.bf16 %v943, %v942
  %v952 = vld [vmem:[%s5] sm:$0xf]
  %v953 = vld [vmem:[%s5 + $0x4] sm:$0xf]
  %v956 = vunpack.c.l.b16 %v952
  %v957 = vunpack.c.l.b16 %v953
  %v958 = vpack.c.b16 %v957, %v956
  %960 = vmatpush.bf16.msra.mxu0 %v951
  %961 = vmatpush.bf16.msra.mxu0 %v950
  %962 = vmatpush.bf16.msra.mxu0 %v949
  %963 = vmatpush.bf16.msra.mxu0 %v948
  %964 = vmatpush.bf16.msra.mxu0 %v947
  %965 = vmatpush.bf16.msra.mxu0 %v946
  %966 = vmatpush.bf16.msra.mxu0 %v945
  %967 = vmatpush.bf16.msra.mxu0 %v944
  %968 = vmatmul.bf16.gmra.mxu0 %v958
  %v969 = vpop.f32.mrf.mxu0
  %v970 = vadd.f32 0.0, %v969
  %v971 = vpop.f32.mrf.mxu0
  %972 = vdwg.mxu0
  %973 = vset.pattern.permute.xlu0 4
  %974 = vperm.xlu0 %973, %v27
  %v975 = vpop.permute.xlu0 %974
  %v977 = vadd.f32 %v970, %v975
  %978 = vst [vmem:[%s7] sm:$0x1] %v977
  // Predicated region
  $region30: #{_forward.1} parent=0 // pred_check
    _
  $region31: #{_forward.1} parent=0 // pred_check_branch
    %980 = sbr.rel (0) target = $region33
  $region32: #{_forward.1} parent=0 // pred_region
    _
  $region33: #{_forward.1} parent=0 // pred_fallthru
    _
  // Predicated region
  $region34: #{_forward.1} parent=0 // pred_check
    _
  $region35: #{_forward.1} parent=0 // pred_check_branch
    %982 = sbr.rel (0) target = $region37
  $region36: #{_forward.1} parent=0 // pred_region
    _
  $region37: #{_forward.1} parent=0 // pred_fallthru
    _

// kernel: _forward.1
$region0: #{_forward.1}
  #allocation0 [shape = 'u32[]', space=smem, size = 0x4, offset = 0x4, fixed_abs, tag = 'smem constant byte address 0x4 - core index']
  #allocation1 [shape = 'u32[72,128]{1,0:T(1,128)}', space=vmem, size = 0x9000, scoped, tag = 'internal scratch']
  %s0 = inlined_call_operand.vmem [shape: bf16[16,128], index: 0, kind: input, shape index: {}]
  %s1 = inlined_call_operand.vmem [shape: bf16[128,16], index: 1, kind: input, shape index: {}]
  %s2 = inlined_call_operand.vmem [shape: bf16[128,128], index: 2, kind: input, shape index: {}]
  %s3 = inlined_call_operand.vmem [shape: bf16[128,128], index: 3, kind: input, shape index: {}]
  %s4 = inlined_call_operand.vmem [shape: bf16[128,128], index: 4, kind: input, shape index: {}]
  %s5 = inlined_call_operand.vmem [shape: bf16[16,128], index: 5, kind: input, shape index: {}]
  %s6 = inlined_call_operand.vmem [shape: f32[128,8], index: 6, kind: input, shape index: {}]
  %s7 = inlined_call_operand.vmem [shape: f32[1,128], index: 7, kind: output, shape index: {}]
  %s8 = sld [smem:[#allocation0]]
  $region38: #{_forward.1} parent=0
    _
  %s10 = ssub.s32 1, %s8
  %s11 = scalar_select 0, %s10, %s8
  // Predicated region
  $region2: #{_forward.1} parent=0 // pred_check
    _
  $region3: #{_forward.1} parent=0 // pred_check_branch
    %13 = sbr.rel (0) target = $region5
  $region4: #{_forward.1} parent=0 // pred_region
    _
  $region5: #{_forward.1} parent=0 // pred_fallthru
    _
  // Predicated region
  $region6: #{_forward.1} parent=0 // pred_check
    _
  $region7: #{_forward.1} parent=0 // pred_check_branch
    %15 = sbr.rel (0) target = $region9
  $region8: #{_forward.1} parent=0 // pred_region
    _
  $region9: #{_forward.1} parent=0 // pred_fallthru
    _
  // Predicated region
  $region10: #{_forward.1} parent=0 // pred_check
    _
  $region11: #{_forward.1} parent=0 // pred_check_branch
    %17 = sbr.rel (0) target = $region13
  $region12: #{_forward.1} parent=0 // pred_region
    _
  $region13: #{_forward.1} parent=0 // pred_fallthru
    _
  // Predicated region
  $region14: #{_forward.1} parent=0 // pred_check
    _
  $region15: #{_forward.1} parent=0 // pred_check_branch
    %19 = sbr.rel (0) target = $region17
  $region16: #{_forward.1} parent=0 // pred_region
    _
  $region17: #{_forward.1} parent=0 // pred_fallthru
    _
  // Predicated region
  $region18: #{_forward.1} parent=0 // pred_check
    _
  $region19: #{_forward.1} parent=0 // pred_check_branch
    %21 = sbr.rel (0) target = $region21
  $region20: #{_forward.1} parent=0 // pred_region
    _
  $region21: #{_forward.1} parent=0 // pred_fallthru
    _
  // Predicated region
  $region22: #{_forward.1} parent=0 // pred_check
    _
  $region23: #{_forward.1} parent=0 // pred_check_branch
    %23 = sbr.rel (0) target = $region25
  $region24: #{_forward.1} parent=0 // pred_region
    _
  $region25: #{_forward.1} parent=0 // pred_fallthru
    _
  // Predicated region
  $region26: #{_forward.1} parent=0 // pred_check
    _
  $region27: #{_forward.1} parent=0 // pred_check_branch
    %25 = sbr.rel (0) target = $region29
  $region28: #{_forward.1} parent=0 // pred_region
    _
  $region29: #{_forward.1} parent=0 // pred_fallthru
    _
  %v26 = vld [vmem:[%s6] sm:$0xff]
  %v27 = vld [vmem:[%s6 + $0x8] sm:$0xff]
  %v28 = vld [vmem:[%s6 + $0x10] sm:$0xff]
  %v29 = vld [vmem:[%s6 + $0x18] sm:$0xff]
  %v30 = vld [vmem:[%s6 + $0x20] sm:$0xff]
  %v31 = vld [vmem:[%s6 + $0x28] sm:$0xff]
  %v32 = vld [vmem:[%s6 + $0x30] sm:$0xff]
  %v33 = vld [vmem:[%s6 + $0x38] sm:$0xff]
  %v34 = vld [vmem:[%s6 + $0x40] sm:$0xff]
  %v35 = vld [vmem:[%s6 + $0x48] sm:$0xff]
  %v36 = vld [vmem:[%s6 + $0x50] sm:$0xff]
  %v37 = vld [vmem:[%s6 + $0x58] sm:$0xff]
  %v38 = vld [vmem:[%s6 + $0x60] sm:$0xff]
  %v39 = vld [vmem:[%s6 + $0x68] sm:$0xff]
  %v40 = vld [vmem:[%s6 + $0x70] sm:$0xff]
  %v41 = vld [vmem:[%s6 + $0x78] sm:$0xff]
  %v42 = vld [vmem:[%s0] sm:$0xf]
  %v43 = vld [vmem:[%s1] sm:$0xf]
  %v44 = vld [vmem:[%s1 + $0x4] sm:$0xf]
  %v45 = vld [vmem:[%s1 + $0x8] sm:$0xf]
  %v46 = vld [vmem:[%s1 + $0xc] sm:$0xf]
  %v47 = vld [vmem:[%s1 + $0x10] sm:$0xf]
  %v48 = vld [vmem:[%s1 + $0x14] sm:$0xf]
  %v49 = vld [vmem:[%s1 + $0x18] sm:$0xf]
  %v50 = vld [vmem:[%s1 + $0x1c] sm:$0xf]
  %v51 = vld [vmem:[%s1 + $0x20] sm:$0xf]
  %v52 = vld [vmem:[%s1 + $0x24] sm:$0xf]
  %v53 = vld [vmem:[%s1 + $0x28] sm:$0xf]
  %v54 = vld [vmem:[%s1 + $0x2c] sm:$0xf]
  %v55 = vld [vmem:[%s1 + $0x30] sm:$0xf]
  %v56 = vld [vmem:[%s1 + $0x34] sm:$0xf]
  %v57 = vld [vmem:[%s1 + $0x38] sm:$0xf]
  %v58 = vld [vmem:[%s1 + $0x3c] sm:$0xf]
  %v59 = vunpack.c.l.bf16 %v43
  %v60 = vunpack.c.l.bf16 %v44
  %v61 = vunpack.c.l.bf16 %v45
  %v62 = vunpack.c.l.bf16 %v46
  %v63 = vunpack.c.l.bf16 %v47
  %v64 = vunpack.c.l.bf16 %v48
  %v65 = vunpack.c.l.bf16 %v49
  %v66 = vunpack.c.l.bf16 %v50
  %v67 = vunpack.c.l.bf16 %v51
  %v68 = vunpack.c.l.bf16 %v52
  %v69 = vunpack.c.l.bf16 %v53
  %v70 = vunpack.c.l.bf16 %v54
  %v71 = vunpack.c.l.bf16 %v55
  %v72 = vunpack.c.l.bf16 %v56
  %v73 = vunpack.c.l.bf16 %v57
  %v74 = vunpack.c.l.bf16 %v58
  %v75 = vunpack.c.l.bf16 %v42
  %77 = vset.pattern.permute.xlu0 0
  %78 = vperm.xlu0 %77, %v59
  %v79 = vpop.permute.xlu0 %78
  %82 = vset.pattern.permute.xlu0 0
  %83 = vperm.xlu0 %82, %v60
  %v84 = vpop.permute.xlu0 %83
  %87 = vset.pattern.permute.xlu0 0
  %88 = vperm.xlu0 %87, %v61
  %v89 = vpop.permute.xlu0 %88
  %92 = vset.pattern.permute.xlu0 0
  %93 = vperm.xlu0 %92, %v62
  %v94 = vpop.permute.xlu0 %93
  %97 = vset.pattern.permute.xlu0 0
  %98 = vperm.xlu0 %97, %v63
  %v99 = vpop.permute.xlu0 %98
  %102 = vset.pattern.permute.xlu0 0
  %103 = vperm.xlu0 %102, %v64
  %v104 = vpop.permute.xlu0 %103
  %107 = vset.pattern.permute.xlu0 0
  %108 = vperm.xlu0 %107, %v65
  %v109 = vpop.permute.xlu0 %108
  %112 = vset.pattern.permute.xlu0 0
  %113 = vperm.xlu0 %112, %v66
  %v114 = vpop.permute.xlu0 %113
  %117 = vset.pattern.permute.xlu0 0
  %118 = vperm.xlu0 %117, %v67
  %v119 = vpop.permute.xlu0 %118
  %122 = vset.pattern.permute.xlu0 0
  %123 = vperm.xlu0 %122, %v68
  %v124 = vpop.permute.xlu0 %123
  %127 = vset.pattern.permute.xlu0 0
  %128 = vperm.xlu0 %127, %v69
  %v129 = vpop.permute.xlu0 %128
  %132 = vset.pattern.permute.xlu0 0
  %133 = vperm.xlu0 %132, %v70
  %v134 = vpop.permute.xlu0 %133
  %137 = vset.pattern.permute.xlu0 0
  %138 = vperm.xlu0 %137, %v71
  %v139 = vpop.permute.xlu0 %138
  %142 = vset.pattern.permute.xlu0 0
  %143 = vperm.xlu0 %142, %v72
  %v144 = vpop.permute.xlu0 %143
  %147 = vset.pattern.permute.xlu0 0
  %148 = vperm.xlu0 %147, %v73
  %v149 = vpop.permute.xlu0 %148
  %152 = vset.pattern.permute.xlu0 0
  %153 = vperm.xlu0 %152, %v74
  %v154 = vpop.permute.xlu0 %153
  %v156 = vperm.slane %v75, 0
  %v157 = vmul.f32 %v79, %v156
  %v158 = vmul.f32 %v84, %v156
  %v159 = vmul.f32 %v89, %v156
  %v160 = vmul.f32 %v94, %v156
  %v161 = vmul.f32 %v99, %v156
  %v162 = vmul.f32 %v104, %v156
  %v163 = vmul.f32 %v109, %v156
  %v164 = vmul.f32 %v114, %v156
  %v165 = vmul.f32 %v119, %v156
  %v166 = vmul.f32 %v124, %v156
  %v167 = vmul.f32 %v129, %v156
  %v168 = vmul.f32 %v134, %v156
  %v169 = vmul.f32 %v139, %v156
  %v170 = vmul.f32 %v144, %v156
  %v171 = vmul.f32 %v149, %v156
  %v172 = vmul.f32 %v154, %v156
  %173 = vset.pattern.permute.xlu0 1
  %174 = vperm.xlu0 %173, %v59
  %v175 = vpop.permute.xlu0 %174
  %177 = vset.pattern.permute.xlu0 1
  %178 = vperm.xlu0 %177, %v60
  %v179 = vpop.permute.xlu0 %178
  %181 = vset.pattern.permute.xlu0 1
  %182 = vperm.xlu0 %181, %v61
  %v183 = vpop.permute.xlu0 %182
  %185 = vset.pattern.permute.xlu0 1
  %186 = vperm.xlu0 %185, %v62
  %v187 = vpop.permute.xlu0 %186
  %189 = vset.pattern.permute.xlu0 1
  %190 = vperm.xlu0 %189, %v63
  %v191 = vpop.permute.xlu0 %190
  %193 = vset.pattern.permute.xlu0 1
  %194 = vperm.xlu0 %193, %v64
  %v195 = vpop.permute.xlu0 %194
  %197 = vset.pattern.permute.xlu0 1
  %198 = vperm.xlu0 %197, %v65
  %v199 = vpop.permute.xlu0 %198
  %201 = vset.pattern.permute.xlu0 1
  %202 = vperm.xlu0 %201, %v66
  %v203 = vpop.permute.xlu0 %202
  %205 = vset.pattern.permute.xlu0 1
  %206 = vperm.xlu0 %205, %v67
  %v207 = vpop.permute.xlu0 %206
  %209 = vset.pattern.permute.xlu0 1
  %210 = vperm.xlu0 %209, %v68
  %v211 = vpop.permute.xlu0 %210
  %213 = vset.pattern.permute.xlu0 1
  %214 = vperm.xlu0 %213, %v69
  %v215 = vpop.permute.xlu0 %214
  %217 = vset.pattern.permute.xlu0 1
  %218 = vperm.xlu0 %217, %v70
  %v219 = vpop.permute.xlu0 %218
  %221 = vset.pattern.permute.xlu0 1
  %222 = vperm.xlu0 %221, %v71
  %v223 = vpop.permute.xlu0 %222
  %225 = vset.pattern.permute.xlu0 1
  %226 = vperm.xlu0 %225, %v72
  %v227 = vpop.permute.xlu0 %226
  %229 = vset.pattern.permute.xlu0 1
  %230 = vperm.xlu0 %229, %v73
  %v231 = vpop.permute.xlu0 %230
  %233 = vset.pattern.permute.xlu0 1
  %234 = vperm.xlu0 %233, %v74
  %v235 = vpop.permute.xlu0 %234
  %v237 = vperm.slane %v75, 1
  %v238 = vmul.f32 %v175, %v237
  %v239 = vmul.f32 %v179, %v237
  %v240 = vmul.f32 %v183, %v237
  %v241 = vmul.f32 %v187, %v237
  %v242 = vmul.f32 %v191, %v237
  %v243 = vmul.f32 %v195, %v237
  %v244 = vmul.f32 %v199, %v237
  %v245 = vmul.f32 %v203, %v237
  %v246 = vmul.f32 %v207, %v237
  %v247 = vmul.f32 %v211, %v237
  %v248 = vmul.f32 %v215, %v237
  %v249 = vmul.f32 %v219, %v237
  %v250 = vmul.f32 %v223, %v237
  %v251 = vmul.f32 %v227, %v237
  %v252 = vmul.f32 %v231, %v237
  %v253 = vmul.f32 %v235, %v237
  %v254 = vadd.f32 %v157, %v238
  %v255 = vadd.f32 %v158, %v239
  %v256 = vadd.f32 %v159, %v240
  %v257 = vadd.f32 %v160, %v241
  %v258 = vadd.f32 %v161, %v242
  %v259 = vadd.f32 %v162, %v243
  %v260 = vadd.f32 %v163, %v244
  %v261 = vadd.f32 %v164, %v245
  %v262 = vadd.f32 %v165, %v246
  %v263 = vadd.f32 %v166, %v247
  %v264 = vadd.f32 %v167, %v248
  %v265 = vadd.f32 %v168, %v249
  %v266 = vadd.f32 %v169, %v250
  %v267 = vadd.f32 %v170, %v251
  %v268 = vadd.f32 %v171, %v252
  %v269 = vadd.f32 %v172, %v253
  %270 = vset.pattern.permute.xlu0 2
  %271 = vperm.xlu0 %270, %v59
  %v272 = vpop.permute.xlu0 %271
  %274 = vset.pattern.permute.xlu0 2
  %275 = vperm.xlu0 %274, %v60
  %v276 = vpop.permute.xlu0 %275
  %278 = vset.pattern.permute.xlu0 2
  %279 = vperm.xlu0 %278, %v61
  %v280 = vpop.permute.xlu0 %279
  %282 = vset.pattern.permute.xlu0 2
  %283 = vperm.xlu0 %282, %v62
  %v284 = vpop.permute.xlu0 %283
  %286 = vset.pattern.permute.xlu0 2
  %287 = vperm.xlu0 %286, %v63
  %v288 = vpop.permute.xlu0 %287
  %290 = vset.pattern.permute.xlu0 2
  %291 = vperm.xlu0 %290, %v64
  %v292 = vpop.permute.xlu0 %291
  %294 = vset.pattern.permute.xlu0 2
  %295 = vperm.xlu0 %294, %v65
  %v296 = vpop.permute.xlu0 %295
  %298 = vset.pattern.permute.xlu0 2
  %299 = vperm.xlu0 %298, %v66
  %v300 = vpop.permute.xlu0 %299
  %302 = vset.pattern.permute.xlu0 2
  %303 = vperm.xlu0 %302, %v67
  %v304 = vpop.permute.xlu0 %303
  %306 = vset.pattern.permute.xlu0 2
  %307 = vperm.xlu0 %306, %v68
  %v308 = vpop.permute.xlu0 %307
  %310 = vset.pattern.permute.xlu0 2
  %311 = vperm.xlu0 %310, %v69
  %v312 = vpop.permute.xlu0 %311
  %314 = vset.pattern.permute.xlu0 2
  %315 = vperm.xlu0 %314, %v70
  %v316 = vpop.permute.xlu0 %315
  %318 = vset.pattern.permute.xlu0 2
  %319 = vperm.xlu0 %318, %v71
  %v320 = vpop.permute.xlu0 %319
  %322 = vset.pattern.permute.xlu0 2
  %323 = vperm.xlu0 %322, %v72
  %v324 = vpop.permute.xlu0 %323
  %326 = vset.pattern.permute.xlu0 2
  %327 = vperm.xlu0 %326, %v73
  %v328 = vpop.permute.xlu0 %327
  %330 = vset.pattern.permute.xlu0 2
  %331 = vperm.xlu0 %330, %v74
  %v332 = vpop.permute.xlu0 %331
  %v334 = vperm.slane %v75, 2
  %v335 = vmul.f32 %v272, %v334
  %v336 = vmul.f32 %v276, %v334
  %v337 = vmul.f32 %v280, %v334
  %v338 = vmul.f32 %v284, %v334
  %v339 = vmul.f32 %v288, %v334
  %v340 = vmul.f32 %v292, %v334
  %v341 = vmul.f32 %v296, %v334
  %v342 = vmul.f32 %v300, %v334
  %v343 = vmul.f32 %v304, %v334
  %v344 = vmul.f32 %v308, %v334
  %v345 = vmul.f32 %v312, %v334
  %v346 = vmul.f32 %v316, %v334
  %v347 = vmul.f32 %v320, %v334
  %v348 = vmul.f32 %v324, %v334
  %v349 = vmul.f32 %v328, %v334
  %v350 = vmul.f32 %v332, %v334
  %v351 = vadd.f32 %v254, %v335
  %v352 = vadd.f32 %v255, %v336
  %v353 = vadd.f32 %v256, %v337
  %v354 = vadd.f32 %v257, %v338
  %v355 = vadd.f32 %v258, %v339
  %v356 = vadd.f32 %v259, %v340
  %v357 = vadd.f32 %v260, %v341
  %v358 = vadd.f32 %v261, %v342
  %v359 = vadd.f32 %v262, %v343
  %v360 = vadd.f32 %v263, %v344
  %v361 = vadd.f32 %v264, %v345
  %v362 = vadd.f32 %v265, %v346
  %v363 = vadd.f32 %v266, %v347
  %v364 = vadd.f32 %v267, %v348
  %v365 = vadd.f32 %v268, %v349
  %v366 = vadd.f32 %v269, %v350
  %368 = vset.pattern.permute.xlu0 0
  %369 = vperm.xlu0 %368, %v26
  %v370 = vpop.permute.xlu0 %369
  %373 = vset.pattern.permute.xlu0 0
  %374 = vperm.xlu0 %373, %v27
  %v375 = vpop.permute.xlu0 %374
  %378 = vset.pattern.permute.xlu0 0
  %379 = vperm.xlu0 %378, %v28
  %v380 = vpop.permute.xlu0 %379
  %383 = vset.pattern.permute.xlu0 0
  %384 = vperm.xlu0 %383, %v29
  %v385 = vpop.permute.xlu0 %384
  %388 = vset.pattern.permute.xlu0 0
  %389 = vperm.xlu0 %388, %v30
  %v390 = vpop.permute.xlu0 %389
  %393 = vset.pattern.permute.xlu0 0
  %394 = vperm.xlu0 %393, %v31
  %v395 = vpop.permute.xlu0 %394
  %398 = vset.pattern.permute.xlu0 0
  %399 = vperm.xlu0 %398, %v32
  %v400 = vpop.permute.xlu0 %399
  %403 = vset.pattern.permute.xlu0 0
  %404 = vperm.xlu0 %403, %v33
  %v405 = vpop.permute.xlu0 %404
  %408 = vset.pattern.permute.xlu0 0
  %409 = vperm.xlu0 %408, %v34
  %v410 = vpop.permute.xlu0 %409
  %413 = vset.pattern.permute.xlu0 0
  %414 = vperm.xlu0 %413, %v35
  %v415 = vpop.permute.xlu0 %414
  %418 = vset.pattern.permute.xlu0 0
  %419 = vperm.xlu0 %418, %v36
  %v420 = vpop.permute.xlu0 %419
  %423 = vset.pattern.permute.xlu0 0
  %424 = vperm.xlu0 %423, %v37
  %v425 = vpop.permute.xlu0 %424
  %428 = vset.pattern.permute.xlu0 0
  %429 = vperm.xlu0 %428, %v38
  %v430 = vpop.permute.xlu0 %429
  %433 = vset.pattern.permute.xlu0 0
  %434 = vperm.xlu0 %433, %v39
  %v435 = vpop.permute.xlu0 %434
  %438 = vset.pattern.permute.xlu0 0
  %439 = vperm.xlu0 %438, %v40
  %v440 = vpop.permute.xlu0 %439
  %443 = vset.pattern.permute.xlu0 0
  %444 = vperm.xlu0 %443, %v41
  %v445 = vpop.permute.xlu0 %444
  %v447 = vadd.f32 %v351, %v370
  %v448 = vadd.f32 %v352, %v375
  %v449 = vadd.f32 %v353, %v380
  %v450 = vadd.f32 %v354, %v385
  %v451 = vadd.f32 %v355, %v390
  %v452 = vadd.f32 %v356, %v395
  %v453 = vadd.f32 %v357, %v400
  %v454 = vadd.f32 %v358, %v405
  %v455 = vadd.f32 %v359, %v410
  %v456 = vadd.f32 %v360, %v415
  %v457 = vadd.f32 %v361, %v420
  %v458 = vadd.f32 %v362, %v425
  %v459 = vadd.f32 %v363, %v430
  %v460 = vadd.f32 %v364, %v435
  %v461 = vadd.f32 %v365, %v440
  %v462 = vadd.f32 %v366, %v445
  %v463 = vmul.f32 %v447, 0.01
  %v464 = vmul.f32 %v448, 0.01
  %v465 = vmul.f32 %v449, 0.01
  %v466 = vmul.f32 %v450, 0.01
  %v467 = vmul.f32 %v451, 0.01
  %v468 = vmul.f32 %v452, 0.01
  %v469 = vmul.f32 %v453, 0.01
  %v470 = vmul.f32 %v454, 0.01
  %v471 = vmul.f32 %v455, 0.01
  %v472 = vmul.f32 %v456, 0.01
  %v473 = vmul.f32 %v457, 0.01
  %v474 = vmul.f32 %v458, 0.01
  %v475 = vmul.f32 %v459, 0.01
  %v476 = vmul.f32 %v460, 0.01
  %v477 = vmul.f32 %v461, 0.01
  %v478 = vmul.f32 %v462, 0.01
  %v479 = vmax.f32 %v447, %v463
  %v480 = vmax.f32 %v448, %v464
  %v481 = vmax.f32 %v449, %v465
  %v482 = vmax.f32 %v450, %v466
  %v483 = vmax.f32 %v451, %v467
  %v484 = vmax.f32 %v452, %v468
  %v485 = vmax.f32 %v453, %v469
  %v486 = vmax.f32 %v454, %v470
  %v487 = vmax.f32 %v455, %v471
  %v488 = vmax.f32 %v456, %v472
  %v489 = vmax.f32 %v457, %v473
  %v490 = vmax.f32 %v458, %v474
  %v491 = vmax.f32 %v459, %v475
  %v492 = vmax.f32 %v460, %v476
  %v493 = vmax.f32 %v461, %v477
  %v494 = vmax.f32 %v462, %v478
  %v495 = vpack.c.bf16 %v480, %v479
  %v496 = vpack.c.bf16 %v482, %v481
  %v497 = vpack.c.bf16 %v484, %v483
  %v498 = vpack.c.bf16 %v486, %v485
  %v499 = vpack.c.bf16 %v488, %v487
  %v500 = vpack.c.bf16 %v490, %v489
  %v501 = vpack.c.bf16 %v492, %v491
  %v502 = vpack.c.bf16 %v494, %v493
  %v503 = vld [vmem:[%s2] sm:$0xf]
  %v504 = vld [vmem:[%s2 + $0x4] sm:$0xf]
  %v505 = vld [vmem:[%s2 + $0x8] sm:$0xf]
  %v506 = vld [vmem:[%s2 + $0xc] sm:$0xf]
  %v507 = vld [vmem:[%s2 + $0x10] sm:$0xf]
  %v508 = vld [vmem:[%s2 + $0x14] sm:$0xf]
  %v509 = vld [vmem:[%s2 + $0x18] sm:$0xf]
  %v510 = vld [vmem:[%s2 + $0x1c] sm:$0xf]
  %v511 = vld [vmem:[%s2 + $0x20] sm:$0xf]
  %v512 = vld [vmem:[%s2 + $0x24] sm:$0xf]
  %v513 = vld [vmem:[%s2 + $0x28] sm:$0xf]
  %v514 = vld [vmem:[%s2 + $0x2c] sm:$0xf]
  %v515 = vld [vmem:[%s2 + $0x30] sm:$0xf]
  %v516 = vld [vmem:[%s2 + $0x34] sm:$0xf]
  %v517 = vld [vmem:[%s2 + $0x38] sm:$0xf]
  %v518 = vld [vmem:[%s2 + $0x3c] sm:$0xf]
  %519 = vset.pattern.permute.xlu0 1
  %520 = vperm.xlu0 %519, %v26
  %v521 = vpop.permute.xlu0 %520
  %523 = vset.pattern.permute.xlu0 1
  %524 = vperm.xlu0 %523, %v27
  %v525 = vpop.permute.xlu0 %524
  %527 = vset.pattern.permute.xlu0 1
  %528 = vperm.xlu0 %527, %v28
  %v529 = vpop.permute.xlu0 %528
  %531 = vset.pattern.permute.xlu0 1
  %532 = vperm.xlu0 %531, %v29
  %v533 = vpop.permute.xlu0 %532
  %535 = vset.pattern.permute.xlu0 1
  %536 = vperm.xlu0 %535, %v30
  %v537 = vpop.permute.xlu0 %536
  %539 = vset.pattern.permute.xlu0 1
  %540 = vperm.xlu0 %539, %v31
  %v541 = vpop.permute.xlu0 %540
  %543 = vset.pattern.permute.xlu0 1
  %544 = vperm.xlu0 %543, %v32
  %v545 = vpop.permute.xlu0 %544
  %547 = vset.pattern.permute.xlu0 1
  %548 = vperm.xlu0 %547, %v33
  %v549 = vpop.permute.xlu0 %548
  %551 = vset.pattern.permute.xlu0 1
  %552 = vperm.xlu0 %551, %v34
  %v553 = vpop.permute.xlu0 %552
  %555 = vset.pattern.permute.xlu0 1
  %556 = vperm.xlu0 %555, %v35
  %v557 = vpop.permute.xlu0 %556
  %559 = vset.pattern.permute.xlu0 1
  %560 = vperm.xlu0 %559, %v36
  %v561 = vpop.permute.xlu0 %560
  %563 = vset.pattern.permute.xlu0 1
  %564 = vperm.xlu0 %563, %v37
  %v565 = vpop.permute.xlu0 %564
  %567 = vset.pattern.permute.xlu0 1
  %568 = vperm.xlu0 %567, %v38
  %v569 = vpop.permute.xlu0 %568
  %571 = vset.pattern.permute.xlu0 1
  %572 = vperm.xlu0 %571, %v39
  %v573 = vpop.permute.xlu0 %572
  %575 = vset.pattern.permute.xlu0 1
  %576 = vperm.xlu0 %575, %v40
  %v577 = vpop.permute.xlu0 %576
  %579 = vset.pattern.permute.xlu0 1
  %580 = vperm.xlu0 %579, %v41
  %v581 = vpop.permute.xlu0 %580
  %v599 = vunpack.c.l.b16 %v503
  %v600 = vunpack.c.l.b16 %v504
  %v601 = vunpack.c.l.b16 %v505
  %v602 = vunpack.c.l.b16 %v506
  %v603 = vunpack.c.l.b16 %v507
  %v604 = vunpack.c.l.b16 %v508
  %v605 = vunpack.c.l.b16 %v509
  %v606 = vunpack.c.l.b16 %v510
  %v607 = vunpack.c.l.b16 %v511
  %v608 = vunpack.c.l.b16 %v512
  %v609 = vunpack.c.l.b16 %v513
  %v610 = vunpack.c.l.b16 %v514
  %v611 = vunpack.c.l.b16 %v515
  %v612 = vunpack.c.l.b16 %v516
  %v613 = vunpack.c.l.b16 %v517
  %v614 = vunpack.c.l.b16 %v518
  %v615 = vpack.c.b16 %v600, %v599
  %v616 = vpack.c.b16 %v602, %v601
  %v617 = vpack.c.b16 %v604, %v603
  %v618 = vpack.c.b16 %v606, %v605
  %v619 = vpack.c.b16 %v608, %v607
  %v620 = vpack.c.b16 %v610, %v609
  %v621 = vpack.c.b16 %v612, %v611
  %v622 = vpack.c.b16 %v614, %v613
  %631 = vmatpush.bf16.msra.mxu0 %v502
  %632 = vmatpush.bf16.msra.mxu0 %v501
  %633 = vmatpush.bf16.msra.mxu0 %v500
  %634 = vmatpush.bf16.msra.mxu0 %v499
  %635 = vmatpush.bf16.msra.mxu0 %v498
  %636 = vmatpush.bf16.msra.mxu0 %v497
  %637 = vmatpush.bf16.msra.mxu0 %v496
  %638 = vmatpush.bf16.msra.mxu0 %v495
  %639 = vmatmul.bf16.gmra.mxu0 %v615
  %v640 = vpop.f32.mrf.mxu0
  %v641 = vadd.f32 %v521, %v640
  %v642 = vpop.f32.mrf.mxu0
  %v643 = vadd.f32 %v525, %v642
  %644 = vmatmul.bf16.gmra.mxu0 %v616
  %v645 = vpop.f32.mrf.mxu0
  %v646 = vadd.f32 %v529, %v645
  %v647 = vpop.f32.mrf.mxu0
  %v648 = vadd.f32 %v533, %v647
  %649 = vmatmul.bf16.gmra.mxu0 %v617
  %v650 = vpop.f32.mrf.mxu0
  %v651 = vadd.f32 %v537, %v650
  %v652 = vpop.f32.mrf.mxu0
  %v653 = vadd.f32 %v541, %v652
  %654 = vmatmul.bf16.gmra.mxu0 %v618
  %v655 = vpop.f32.mrf.mxu0
  %v656 = vadd.f32 %v545, %v655
  %v657 = vpop.f32.mrf.mxu0
  %v658 = vadd.f32 %v549, %v657
  %659 = vmatmul.bf16.gmra.mxu0 %v619
  %v660 = vpop.f32.mrf.mxu0
  %v661 = vadd.f32 %v553, %v660
  %v662 = vpop.f32.mrf.mxu0
  %v663 = vadd.f32 %v557, %v662
  %664 = vmatmul.bf16.gmra.mxu0 %v620
  %v665 = vpop.f32.mrf.mxu0
  %v666 = vadd.f32 %v561, %v665
  %v667 = vpop.f32.mrf.mxu0
  %v668 = vadd.f32 %v565, %v667
  %669 = vmatmul.bf16.gmra.mxu0 %v621
  %v670 = vpop.f32.mrf.mxu0
  %v671 = vadd.f32 %v569, %v670
  %v672 = vpop.f32.mrf.mxu0
  %v673 = vadd.f32 %v573, %v672
  %674 = vmatmul.bf16.gmra.mxu0 %v622
  %v675 = vpop.f32.mrf.mxu0
  %v676 = vadd.f32 %v577, %v675
  %v677 = vpop.f32.mrf.mxu0
  %v678 = vadd.f32 %v581, %v677
  %679 = vdwg.mxu0
  %v680 = vmul.f32 %v641, 0.01
  %v681 = vmul.f32 %v643, 0.01
  %v682 = vmul.f32 %v646, 0.01
  %v683 = vmul.f32 %v648, 0.01
  %v684 = vmul.f32 %v651, 0.01
  %v685 = vmul.f32 %v653, 0.01
  %v686 = vmul.f32 %v656, 0.01
  %v687 = vmul.f32 %v658, 0.01
  %v688 = vmul.f32 %v661, 0.01
  %v689 = vmul.f32 %v663, 0.01
  %v690 = vmul.f32 %v666, 0.01
  %v691 = vmul.f32 %v668, 0.01
  %v692 = vmul.f32 %v671, 0.01
  %v693 = vmul.f32 %v673, 0.01
  %v694 = vmul.f32 %v676, 0.01
  %v695 = vmul.f32 %v678, 0.01
  %v696 = vmax.f32 %v641, %v680
  %v697 = vmax.f32 %v643, %v681
  %v698 = vmax.f32 %v646, %v682
  %v699 = vmax.f32 %v648, %v683
  %v700 = vmax.f32 %v651, %v684
  %v701 = vmax.f32 %v653, %v685
  %v702 = vmax.f32 %v656, %v686
  %v703 = vmax.f32 %v658, %v687
  %v704 = vmax.f32 %v661, %v688
  %v705 = vmax.f32 %v663, %v689
  %v706 = vmax.f32 %v666, %v690
  %v707 = vmax.f32 %v668, %v691
  %v708 = vmax.f32 %v671, %v692
  %v709 = vmax.f32 %v673, %v693
  %v710 = vmax.f32 %v676, %v694
  %v711 = vmax.f32 %v678, %v695
  %v712 = vpack.c.bf16 %v697, %v696
  %v713 = vpack.c.bf16 %v699, %v698
  %v714 = vpack.c.bf16 %v701, %v700
  %v715 = vpack.c.bf16 %v703, %v702
  %v716 = vpack.c.bf16 %v705, %v704
  %v717 = vpack.c.bf16 %v707, %v706
  %v718 = vpack.c.bf16 %v709, %v708
  %v719 = vpack.c.bf16 %v711, %v710
  %v720 = vld [vmem:[%s3] sm:$0xf]
  %v721 = vld [vmem:[%s3 + $0x4] sm:$0xf]
  %v722 = vld [vmem:[%s3 + $0x8] sm:$0xf]
  %v723 = vld [vmem:[%s3 + $0xc] sm:$0xf]
  %v724 = vld [vmem:[%s3 + $0x10] sm:$0xf]
  %v725 = vld [vmem:[%s3 + $0x14] sm:$0xf]
  %v726 = vld [vmem:[%s3 + $0x18] sm:$0xf]
  %v727 = vld [vmem:[%s3 + $0x1c] sm:$0xf]
  %v728 = vld [vmem:[%s3 + $0x20] sm:$0xf]
  %v729 = vld [vmem:[%s3 + $0x24] sm:$0xf]
  %v730 = vld [vmem:[%s3 + $0x28] sm:$0xf]
  %v731 = vld [vmem:[%s3 + $0x2c] sm:$0xf]
  %v732 = vld [vmem:[%s3 + $0x30] sm:$0xf]
  %v733 = vld [vmem:[%s3 + $0x34] sm:$0xf]
  %v734 = vld [vmem:[%s3 + $0x38] sm:$0xf]
  %v735 = vld [vmem:[%s3 + $0x3c] sm:$0xf]
  %736 = vset.pattern.permute.xlu0 2
  %737 = vperm.xlu0 %736, %v26
  %v738 = vpop.permute.xlu0 %737
  %740 = vset.pattern.permute.xlu0 2
  %741 = vperm.xlu0 %740, %v27
  %v742 = vpop.permute.xlu0 %741
  %744 = vset.pattern.permute.xlu0 2
  %745 = vperm.xlu0 %744, %v28
  %v746 = vpop.permute.xlu0 %745
  %748 = vset.pattern.permute.xlu0 2
  %749 = vperm.xlu0 %748, %v29
  %v750 = vpop.permute.xlu0 %749
  %752 = vset.pattern.permute.xlu0 2
  %753 = vperm.xlu0 %752, %v30
  %v754 = vpop.permute.xlu0 %753
  %756 = vset.pattern.permute.xlu0 2
  %757 = vperm.xlu0 %756, %v31
  %v758 = vpop.permute.xlu0 %757
  %760 = vset.pattern.permute.xlu0 2
  %761 = vperm.xlu0 %760, %v32
  %v762 = vpop.permute.xlu0 %761
  %764 = vset.pattern.permute.xlu0 2
  %765 = vperm.xlu0 %764, %v33
  %v766 = vpop.permute.xlu0 %765
  %768 = vset.pattern.permute.xlu0 2
  %769 = vperm.xlu0 %768, %v34
  %v770 = vpop.permute.xlu0 %769
  %772 = vset.pattern.permute.xlu0 2
  %773 = vperm.xlu0 %772, %v35
  %v774 = vpop.permute.xlu0 %773
  %776 = vset.pattern.permute.xlu0 2
  %777 = vperm.xlu0 %776, %v36
  %v778 = vpop.permute.xlu0 %777
  %780 = vset.pattern.permute.xlu0 2
  %781 = vperm.xlu0 %780, %v37
  %v782 = vpop.permute.xlu0 %781
  %784 = vset.pattern.permute.xlu0 2
  %785 = vperm.xlu0 %784, %v38
  %v786 = vpop.permute.xlu0 %785
  %788 = vset.pattern.permute.xlu0 2
  %789 = vperm.xlu0 %788, %v39
  %v790 = vpop.permute.xlu0 %789
  %792 = vset.pattern.permute.xlu0 2
  %793 = vperm.xlu0 %792, %v40
  %v794 = vpop.permute.xlu0 %793
  %796 = vset.pattern.permute.xlu0 2
  %797 = vperm.xlu0 %796, %v41
  %v798 = vpop.permute.xlu0 %797
  %v816 = vunpack.c.l.b16 %v720
  %v817 = vunpack.c.l.b16 %v721
  %v818 = vunpack.c.l.b16 %v722
  %v819 = vunpack.c.l.b16 %v723
  %v820 = vunpack.c.l.b16 %v724
  %v821 = vunpack.c.l.b16 %v725
  %v822 = vunpack.c.l.b16 %v726
  %v823 = vunpack.c.l.b16 %v727
  %v824 = vunpack.c.l.b16 %v728
  %v825 = vunpack.c.l.b16 %v729
  %v826 = vunpack.c.l.b16 %v730
  %v827 = vunpack.c.l.b16 %v731
  %v828 = vunpack.c.l.b16 %v732
  %v829 = vunpack.c.l.b16 %v733
  %v830 = vunpack.c.l.b16 %v734
  %v831 = vunpack.c.l.b16 %v735
  %v832 = vpack.c.b16 %v817, %v816
  %v833 = vpack.c.b16 %v819, %v818
  %v834 = vpack.c.b16 %v821, %v820
  %v835 = vpack.c.b16 %v823, %v822
  %v836 = vpack.c.b16 %v825, %v824
  %v837 = vpack.c.b16 %v827, %v826
  %v838 = vpack.c.b16 %v829, %v828
  %v839 = vpack.c.b16 %v831, %v830
  %848 = vmatpush.bf16.msra.mxu0 %v719
  %849 = vmatpush.bf16.msra.mxu0 %v718
  %850 = vmatpush.bf16.msra.mxu0 %v717
  %851 = vmatpush.bf16.msra.mxu0 %v716
  %852 = vmatpush.bf16.msra.mxu0 %v715
  %853 = vmatpush.bf16.msra.mxu0 %v714
  %854 = vmatpush.bf16.msra.mxu0 %v713
  %855 = vmatpush.bf16.msra.mxu0 %v712
  %856 = vmatmul.bf16.gmra.mxu0 %v832
  %v857 = vpop.f32.mrf.mxu0
  %v858 = vadd.f32 %v738, %v857
  %v859 = vpop.f32.mrf.mxu0
  %v860 = vadd.f32 %v742, %v859
  %861 = vmatmul.bf16.gmra.mxu0 %v833
  %v862 = vpop.f32.mrf.mxu0
  %v863 = vadd.f32 %v746, %v862
  %v864 = vpop.f32.mrf.mxu0
  %v865 = vadd.f32 %v750, %v864
  %866 = vmatmul.bf16.gmra.mxu0 %v834
  %v867 = vpop.f32.mrf.mxu0
  %v868 = vadd.f32 %v754, %v867
  %v869 = vpop.f32.mrf.mxu0
  %v870 = vadd.f32 %v758, %v869
  %871 = vmatmul.bf16.gmra.mxu0 %v835
  %v872 = vpop.f32.mrf.mxu0
  %v873 = vadd.f32 %v762, %v872
  %v874 = vpop.f32.mrf.mxu0
  %v875 = vadd.f32 %v766, %v874
  %876 = vmatmul.bf16.gmra.mxu0 %v836
  %v877 = vpop.f32.mrf.mxu0
  %v878 = vadd.f32 %v770, %v877
  %v879 = vpop.f32.mrf.mxu0
  %v880 = vadd.f32 %v774, %v879
  %881 = vmatmul.bf16.gmra.mxu0 %v837
  %v882 = vpop.f32.mrf.mxu0
  %v883 = vadd.f32 %v778, %v882
  %v884 = vpop.f32.mrf.mxu0
  %v885 = vadd.f32 %v782, %v884
  %886 = vmatmul.bf16.gmra.mxu0 %v838
  %v887 = vpop.f32.mrf.mxu0
  %v888 = vadd.f32 %v786, %v887
  %v889 = vpop.f32.mrf.mxu0
  %v890 = vadd.f32 %v790, %v889
  %891 = vmatmul.bf16.gmra.mxu0 %v839
  %v892 = vpop.f32.mrf.mxu0
  %v893 = vadd.f32 %v794, %v892
  %v894 = vpop.f32.mrf.mxu0
  %v895 = vadd.f32 %v798, %v894
  %896 = vdwg.mxu0
  %v897 = vmul.f32 %v858, 0.01
  %v898 = vmul.f32 %v860, 0.01
  %v899 = vmul.f32 %v863, 0.01
  %v900 = vmul.f32 %v865, 0.01
  %v901 = vmul.f32 %v868, 0.01
  %v902 = vmul.f32 %v870, 0.01
  %v903 = vmul.f32 %v873, 0.01
  %v904 = vmul.f32 %v875, 0.01
  %v905 = vmul.f32 %v878, 0.01
  %v906 = vmul.f32 %v880, 0.01
  %v907 = vmul.f32 %v883, 0.01
  %v908 = vmul.f32 %v885, 0.01
  %v909 = vmul.f32 %v888, 0.01
  %v910 = vmul.f32 %v890, 0.01
  %v911 = vmul.f32 %v893, 0.01
  %v912 = vmul.f32 %v895, 0.01
  %v913 = vmax.f32 %v858, %v897
  %v914 = vmax.f32 %v860, %v898
  %v915 = vmax.f32 %v863, %v899
  %v916 = vmax.f32 %v865, %v900
  %v917 = vmax.f32 %v868, %v901
  %v918 = vmax.f32 %v870, %v902
  %v919 = vmax.f32 %v873, %v903
  %v920 = vmax.f32 %v875, %v904
  %v921 = vmax.f32 %v878, %v905
  %v922 = vmax.f32 %v880, %v906
  %v923 = vmax.f32 %v883, %v907
  %v924 = vmax.f32 %v885, %v908
  %v925 = vmax.f32 %v888, %v909
  %v926 = vmax.f32 %v890, %v910
  %v927 = vmax.f32 %v893, %v911
  %v928 = vmax.f32 %v895, %v912
  %v929 = vpack.c.bf16 %v914, %v913
  %v930 = vpack.c.bf16 %v916, %v915
  %v931 = vpack.c.bf16 %v918, %v917
  %v932 = vpack.c.bf16 %v920, %v919
  %v933 = vpack.c.bf16 %v922, %v921
  %v934 = vpack.c.bf16 %v924, %v923
  %v935 = vpack.c.bf16 %v926, %v925
  %v936 = vpack.c.bf16 %v928, %v927
  %v937 = vld [vmem:[%s4] sm:$0xf]
  %v938 = vld [vmem:[%s4 + $0x4] sm:$0xf]
  %v939 = vld [vmem:[%s4 + $0x8] sm:$0xf]
  %v940 = vld [vmem:[%s4 + $0xc] sm:$0xf]
  %v941 = vld [vmem:[%s4 + $0x10] sm:$0xf]
  %v942 = vld [vmem:[%s4 + $0x14] sm:$0xf]
  %v943 = vld [vmem:[%s4 + $0x18] sm:$0xf]
  %v944 = vld [vmem:[%s4 + $0x1c] sm:$0xf]
  %v945 = vld [vmem:[%s4 + $0x20] sm:$0xf]
  %v946 = vld [vmem:[%s4 + $0x24] sm:$0xf]
  %v947 = vld [vmem:[%s4 + $0x28] sm:$0xf]
  %v948 = vld [vmem:[%s4 + $0x2c] sm:$0xf]
  %v949 = vld [vmem:[%s4 + $0x30] sm:$0xf]
  %v950 = vld [vmem:[%s4 + $0x34] sm:$0xf]
  %v951 = vld [vmem:[%s4 + $0x38] sm:$0xf]
  %v952 = vld [vmem:[%s4 + $0x3c] sm:$0xf]
  %953 = vset.pattern.permute.xlu0 3
  %954 = vperm.xlu0 %953, %v26
  %v955 = vpop.permute.xlu0 %954
  %957 = vset.pattern.permute.xlu0 3
  %958 = vperm.xlu0 %957, %v27
  %v959 = vpop.permute.xlu0 %958
  %961 = vset.pattern.permute.xlu0 3
  %962 = vperm.xlu0 %961, %v28
  %v963 = vpop.permute.xlu0 %962
  %965 = vset.pattern.permute.xlu0 3
  %966 = vperm.xlu0 %965, %v29
  %v967 = vpop.permute.xlu0 %966
  %969 = vset.pattern.permute.xlu0 3
  %970 = vperm.xlu0 %969, %v30
  %v971 = vpop.permute.xlu0 %970
  %973 = vset.pattern.permute.xlu0 3
  %974 = vperm.xlu0 %973, %v31
  %v975 = vpop.permute.xlu0 %974
  %977 = vset.pattern.permute.xlu0 3
  %978 = vperm.xlu0 %977, %v32
  %v979 = vpop.permute.xlu0 %978
  %981 = vset.pattern.permute.xlu0 3
  %982 = vperm.xlu0 %981, %v33
  %v983 = vpop.permute.xlu0 %982
  %985 = vset.pattern.permute.xlu0 3
  %986 = vperm.xlu0 %985, %v34
  %v987 = vpop.permute.xlu0 %986
  %989 = vset.pattern.permute.xlu0 3
  %990 = vperm.xlu0 %989, %v35
  %v991 = vpop.permute.xlu0 %990
  %993 = vset.pattern.permute.xlu0 3
  %994 = vperm.xlu0 %993, %v36
  %v995 = vpop.permute.xlu0 %994
  %997 = vset.pattern.permute.xlu0 3
  %998 = vperm.xlu0 %997, %v37
  %v999 = vpop.permute.xlu0 %998
  %1001 = vset.pattern.permute.xlu0 3
  %1002 = vperm.xlu0 %1001, %v38
  %v1003 = vpop.permute.xlu0 %1002
  %1005 = vset.pattern.permute.xlu0 3
  %1006 = vperm.xlu0 %1005, %v39
  %v1007 = vpop.permute.xlu0 %1006
  %1009 = vset.pattern.permute.xlu0 3
  %1010 = vperm.xlu0 %1009, %v40
  %v1011 = vpop.permute.xlu0 %1010
  %1013 = vset.pattern.permute.xlu0 3
  %1014 = vperm.xlu0 %1013, %v41
  %v1015 = vpop.permute.xlu0 %1014
  %v1033 = vunpack.c.l.b16 %v937
  %v1034 = vunpack.c.l.b16 %v938
  %v1035 = vunpack.c.l.b16 %v939
  %v1036 = vunpack.c.l.b16 %v940
  %v1037 = vunpack.c.l.b16 %v941
  %v1038 = vunpack.c.l.b16 %v942
  %v1039 = vunpack.c.l.b16 %v943
  %v1040 = vunpack.c.l.b16 %v944
  %v1041 = vunpack.c.l.b16 %v945
  %v1042 = vunpack.c.l.b16 %v946
  %v1043 = vunpack.c.l.b16 %v947
  %v1044 = vunpack.c.l.b16 %v948
  %v1045 = vunpack.c.l.b16 %v949
  %v1046 = vunpack.c.l.b16 %v950
  %v1047 = vunpack.c.l.b16 %v951
  %v1048 = vunpack.c.l.b16 %v952
  %v1049 = vpack.c.b16 %v1034, %v1033
  %v1050 = vpack.c.b16 %v1036, %v1035
  %v1051 = vpack.c.b16 %v1038, %v1037
  %v1052 = vpack.c.b16 %v1040, %v1039
  %v1053 = vpack.c.b16 %v1042, %v1041
  %v1054 = vpack.c.b16 %v1044, %v1043
  %v1055 = vpack.c.b16 %v1046, %v1045
  %v1056 = vpack.c.b16 %v1048, %v1047
  %1065 = vmatpush.bf16.msra.mxu0 %v936
  %1066 = vmatpush.bf16.msra.mxu0 %v935
  %1067 = vmatpush.bf16.msra.mxu0 %v934
  %1068 = vmatpush.bf16.msra.mxu0 %v933
  %1069 = vmatpush.bf16.msra.mxu0 %v932
  %1070 = vmatpush.bf16.msra.mxu0 %v931
  %1071 = vmatpush.bf16.msra.mxu0 %v930
  %1072 = vmatpush.bf16.msra.mxu0 %v929
  %1073 = vmatmul.bf16.gmra.mxu0 %v1049
  %v1074 = vpop.f32.mrf.mxu0
  %v1075 = vadd.f32 %v955, %v1074
  %v1076 = vpop.f32.mrf.mxu0
  %v1077 = vadd.f32 %v959, %v1076
  %1078 = vmatmul.bf16.gmra.mxu0 %v1050
  %v1079 = vpop.f32.mrf.mxu0
  %v1080 = vadd.f32 %v963, %v1079
  %v1081 = vpop.f32.mrf.mxu0
  %v1082 = vadd.f32 %v967, %v1081
  %1083 = vmatmul.bf16.gmra.mxu0 %v1051
  %v1084 = vpop.f32.mrf.mxu0
  %v1085 = vadd.f32 %v971, %v1084
  %v1086 = vpop.f32.mrf.mxu0
  %v1087 = vadd.f32 %v975, %v1086
  %1088 = vmatmul.bf16.gmra.mxu0 %v1052
  %v1089 = vpop.f32.mrf.mxu0
  %v1090 = vadd.f32 %v979, %v1089
  %v1091 = vpop.f32.mrf.mxu0
  %v1092 = vadd.f32 %v983, %v1091
  %1093 = vmatmul.bf16.gmra.mxu0 %v1053
  %v1094 = vpop.f32.mrf.mxu0
  %v1095 = vadd.f32 %v987, %v1094
  %v1096 = vpop.f32.mrf.mxu0
  %v1097 = vadd.f32 %v991, %v1096
  %1098 = vmatmul.bf16.gmra.mxu0 %v1054
  %v1099 = vpop.f32.mrf.mxu0
  %v1100 = vadd.f32 %v995, %v1099
  %v1101 = vpop.f32.mrf.mxu0
  %v1102 = vadd.f32 %v999, %v1101
  %1103 = vmatmul.bf16.gmra.mxu0 %v1055
  %v1104 = vpop.f32.mrf.mxu0
  %v1105 = vadd.f32 %v1003, %v1104
  %v1106 = vpop.f32.mrf.mxu0
  %v1107 = vadd.f32 %v1007, %v1106
  %1108 = vmatmul.bf16.gmra.mxu0 %v1056
  %v1109 = vpop.f32.mrf.mxu0
  %v1110 = vadd.f32 %v1011, %v1109
  %v1111 = vpop.f32.mrf.mxu0
  %v1112 = vadd.f32 %v1015, %v1111
  %1113 = vdwg.mxu0
  %v1114 = vmul.f32 %v1075, 0.01
  %v1115 = vmul.f32 %v1077, 0.01
  %v1116 = vmul.f32 %v1080, 0.01
  %v1117 = vmul.f32 %v1082, 0.01
  %v1118 = vmul.f32 %v1085, 0.01
  %v1119 = vmul.f32 %v1087, 0.01
  %v1120 = vmul.f32 %v1090, 0.01
  %v1121 = vmul.f32 %v1092, 0.01
  %v1122 = vmul.f32 %v1095, 0.01
  %v1123 = vmul.f32 %v1097, 0.01
  %v1124 = vmul.f32 %v1100, 0.01
  %v1125 = vmul.f32 %v1102, 0.01
  %v1126 = vmul.f32 %v1105, 0.01
  %v1127 = vmul.f32 %v1107, 0.01
  %v1128 = vmul.f32 %v1110, 0.01
  %v1129 = vmul.f32 %v1112, 0.01
  %v1130 = vmax.f32 %v1075, %v1114
  %v1131 = vmax.f32 %v1077, %v1115
  %v1132 = vmax.f32 %v1080, %v1116
  %v1133 = vmax.f32 %v1082, %v1117
  %v1134 = vmax.f32 %v1085, %v1118
  %v1135 = vmax.f32 %v1087, %v1119
  %v1136 = vmax.f32 %v1090, %v1120
  %v1137 = vmax.f32 %v1092, %v1121
  %v1138 = vmax.f32 %v1095, %v1122
  %v1139 = vmax.f32 %v1097, %v1123
  %v1140 = vmax.f32 %v1100, %v1124
  %v1141 = vmax.f32 %v1102, %v1125
  %v1142 = vmax.f32 %v1105, %v1126
  %v1143 = vmax.f32 %v1107, %v1127
  %v1144 = vmax.f32 %v1110, %v1128
  %v1145 = vmax.f32 %v1112, %v1129
  %v1146 = vpack.c.bf16 %v1131, %v1130
  %v1147 = vpack.c.bf16 %v1133, %v1132
  %v1148 = vpack.c.bf16 %v1135, %v1134
  %v1149 = vpack.c.bf16 %v1137, %v1136
  %v1150 = vpack.c.bf16 %v1139, %v1138
  %v1151 = vpack.c.bf16 %v1141, %v1140
  %v1152 = vpack.c.bf16 %v1143, %v1142
  %v1153 = vpack.c.bf16 %v1145, %v1144
  %v1154 = vld [vmem:[%s5] sm:$0xf]
  %v1155 = vld [vmem:[%s5 + $0x4] sm:$0xf]
  %v1158 = vunpack.c.l.b16 %v1154
  %v1159 = vunpack.c.l.b16 %v1155
  %v1160 = vpack.c.b16 %v1159, %v1158
  %1162 = vmatpush.bf16.msra.mxu0 %v1153
  %1163 = vmatpush.bf16.msra.mxu0 %v1152
  %1164 = vmatpush.bf16.msra.mxu0 %v1151
  %1165 = vmatpush.bf16.msra.mxu0 %v1150
  %1166 = vmatpush.bf16.msra.mxu0 %v1149
  %1167 = vmatpush.bf16.msra.mxu0 %v1148
  %1168 = vmatpush.bf16.msra.mxu0 %v1147
  %1169 = vmatpush.bf16.msra.mxu0 %v1146
  %1170 = vmatmul.bf16.gmra.mxu0 %v1160
  %v1171 = vpop.f32.mrf.mxu0
  %v1172 = vadd.f32 0.0, %v1171
  %v1173 = vpop.f32.mrf.mxu0
  %1174 = vdwg.mxu0
  %1175 = vset.pattern.permute.xlu0 4
  %1176 = vperm.xlu0 %1175, %v26
  %v1177 = vpop.permute.xlu0 %1176
  %v1179 = vadd.f32 %v1172, %v1177
  %1180 = vst [vmem:[%s7] sm:$0x1] %v1179
  // Predicated region
  $region30: #{_forward.1} parent=0 // pred_check
    _
  $region31: #{_forward.1} parent=0 // pred_check_branch
    %1182 = sbr.rel (0) target = $region33
  $region32: #{_forward.1} parent=0 // pred_region
    _
  $region33: #{_forward.1} parent=0 // pred_fallthru
    _
  // Predicated region
  $region34: #{_forward.1} parent=0 // pred_check
    _
  $region35: #{_forward.1} parent=0 // pred_check_branch
    %1184 = sbr.rel (0) target = $region37
  $region36: #{_forward.1} parent=0 // pred_region
    _
  $region37: #{_forward.1} parent=0 // pred_fallthru
    _

</llo_original>
